<compile_context>
chip_gen: v7x
topology: tpu7x:2x2x1
jax: 0.10.0
libtpu: 0.0.40
codegen_flags: <defaults>
</compile_context>

<pallas_src>
import functools

import jax
import jax.numpy as jnp
from jax.experimental import pallas as pl
from jax.experimental.pallas import tpu as pltpu


def _focus_kernel(x_ref, w_ref, b_ref, o_ref, *, negative_slope):
    # x_ref: (1, 1, C4, TH+2, W2+2) bf16  zero-padded space-to-depth row tile
    #        (W on the lane axis -> no C4->128 lane padding on the DMA block)
    # w_ref: (Cout, 9*C4) bf16            im2col conv weight, BN scale folded
    # b_ref: (Cout, 1)    f32             folded BN bias
    # o_ref: (1, Cout, TH, W2)            NCHW output row tile (lane-dense W2)
    c4 = x_ref.shape[2]
    _, cout, th, w2 = o_ref.shape

    x = x_ref[0, 0]                                        # (C4, TH+2, W2+2)

    # In-VMEM im2col: K = 9*C4 so the whole 3x3 conv is ONE MXU matmul
    # (instead of 9 K=C4 matmuls + 8 f32 accumulator read-modify-write passes).
    patches = jnp.concatenate(
        [x[:, dy:dy + th, dx:dx + w2].reshape(c4, th * w2)
         for dy in range(3) for dx in range(3)], axis=0)   # (9*C4, TH*W2)

    acc = jnp.dot(w_ref[...], patches,
                  preferred_element_type=jnp.float32)      # (Cout, TH*W2) f32

    y = acc + b_ref[...]                                   # folded BN bias
    y = jnp.where(y > 0, y, y * negative_slope)            # LeakyReLU
    o_ref[0] = y.reshape(cout, th, w2).astype(o_ref.dtype)


def _pick_tile_rows(h2, target=32):
    """Largest row tile <= target that divides H2 and keeps (8,128) tiling."""
    if h2 <= target:
        return h2
    for th in range(min(target, h2), 7, -1):
        if h2 % th == 0 and th % 8 == 0:
            return th
    return h2          # fall back to whole image (block == full dim is legal)


def focus_forward(x, weight, gamma, beta, running_mean, running_var,
                  eps=1e-5, negative_slope=0.01, tile_rows=32):
    """Focus.forward with inference-mode BatchNorm.  x: (N, Cin, H, W) NCHW."""
    N, Cin, H, W = x.shape
    Cout, C4, KH, KW = weight.shape
    assert C4 == Cin * 4 and KH == 3 and KW == 3
    assert H % 2 == 0 and W % 2 == 0
    H2, W2 = H // 2, W // 2

    TH = _pick_tile_rows(H2, tile_rows)
    T = H2 // TH

    # Space-to-depth, matching PyTorch Focus channel order exactly (NCHW).
    # TODO(synk): the stride-2 gather / zero-pad / halo-tile cut stay as
    # wrapper-side XLA layout prep (one fused producer pass) rather than
    # in-kernel pl.ds(stride=2) reads.
    flat = jnp.concatenate(
        [x[..., 0::2, 0::2], x[..., 1::2, 0::2],
         x[..., 0::2, 1::2], x[..., 1::2, 1::2]], axis=1)       # (N, C4, H2, W2)

    # bf16 operands for the MXU (f32 accumulation in-kernel), zero-pad for the
    # 3x3 conv, and cut overlapping row tiles (1-row halo each side) so the
    # Pallas grid blocks are non-overlapping and auto-pipelined.
    xp = jnp.pad(flat.astype(jnp.bfloat16),
                 ((0, 0), (0, 0), (1, 1), (1, 1)))              # (N,C4,H2+2,W2+2)
    xt = jnp.stack([xp[:, :, t * TH:t * TH + TH + 2, :] for t in range(T)],
                   axis=1)                                      # (N,T,C4,TH+2,W2+2)

    # Fold inference-mode BatchNorm into the conv weight (scale) and a bias.
    # TODO(synk): training-mode BatchNorm (batch statistics + running-stat
    # update) is not implemented; this is the inference forward pass.
    inv_std = 1.0 / jnp.sqrt(running_var.astype(jnp.float32) + eps)
    scale = gamma.astype(jnp.float32) * inv_std                       # (Cout,)
    bias = (beta.astype(jnp.float32)
            - running_mean.astype(jnp.float32) * scale).reshape(Cout, 1)

    # Conv weight OIHW -> (Cout, 9*C4) im2col matrix; column order (dy, dx, c)
    # matches the in-kernel patch construction.  BN scale folded in.
    w2d = jnp.transpose(weight, (0, 2, 3, 1)).reshape(Cout, 9 * C4)
    w2d = (w2d.astype(jnp.float32) * scale[:, None]).astype(jnp.bfloat16)

    kernel = functools.partial(_focus_kernel, negative_slope=negative_slope)

    return pl.pallas_call(
        kernel,
        out_shape=jax.ShapeDtypeStruct((N, Cout, H2, W2), x.dtype),
        grid=(N, T),
        in_specs=[
            pl.BlockSpec((1, 1, C4, TH + 2, W2 + 2),
                         lambda n, t: (n, t, 0, 0, 0)),
            pl.BlockSpec((Cout, 9 * C4), lambda n, t: (0, 0)),   # resident
            pl.BlockSpec((Cout, 1), lambda n, t: (0, 0)),        # resident
        ],
        out_specs=pl.BlockSpec((1, Cout, TH, W2), lambda n, t: (n, 0, t, 0)),
        compiler_params=pltpu.CompilerParams(
            dimension_semantics=("parallel", "parallel"),
            vmem_limit_bytes=48 * 1024 * 1024),
    )(xt, w2d, bias)


def _focus_reference(x, weight, gamma, beta, running_mean, running_var,
                     eps=1e-5, negative_slope=0.01):
    """Pure-JAX reference (XLA conv), inference-mode BN, LeakyReLU."""
    flat = jnp.concatenate(
        [x[..., 0::2, 0::2], x[..., 1::2, 0::2],
         x[..., 0::2, 1::2], x[..., 1::2, 1::2]], axis=1)
    y = jax.lax.conv_general_dilated(
        flat, weight, window_strides=(1, 1), padding=((1, 1), (1, 1)),
        dimension_numbers=("NCHW", "OIHW", "NCHW"))
    scale = gamma / jnp.sqrt(running_var + eps)
    bias = beta - running_mean * scale
    y = y * scale[None, :, None, None] + bias[None, :, None, None]
    return jnp.where(y > 0, y, y * negative_slope)


if __name__ == "__main__":
    key = jax.random.PRNGKey(0)
    k_x, k_w, k_g, k_b, k_m, k_v = jax.random.split(key, 6)

    N, Cin, H, W = 2, 4, 16, 16
    Cout = 8                                   # round(cout * e) with e=1.0

    x = jax.random.normal(k_x, (N, Cin, H, W), dtype=jnp.float32)
    weight = jax.random.normal(k_w, (Cout, Cin * 4, 3, 3), dtype=jnp.float32) * 0.1
    gamma = 1.0 + 0.1 * jax.random.normal(k_g, (Cout,), dtype=jnp.float32)
    beta = 0.1 * jax.random.normal(k_b, (Cout,), dtype=jnp.float32)
    running_mean = 0.1 * jax.random.normal(k_m, (Cout,), dtype=jnp.float32)
    running_var = jnp.abs(jax.random.normal(k_v, (Cout,), dtype=jnp.float32)) + 0.5

    out = focus_forward(x, weight, gamma, beta, running_mean, running_var)
    out = jax.block_until_ready(out)

    ref = jax.block_until_ready(
        _focus_reference(x, weight, gamma, beta, running_mean, running_var))

    assert out.shape == (N, Cout, H // 2, W // 2), out.shape
    assert jnp.allclose(out, ref, atol=5e-2, rtol=5e-2), (
        "mismatch vs reference Focus forward: max abs diff = "
        f"{float(jnp.max(jnp.abs(out - ref)))}")

    print("KERNEL_OK")
</pallas_src>

<mosaic_0001>
module attributes {stable_mosaic.version = 11 : i64} {
  func.func @_focus_kernel(%arg0: i32, %arg1: i32, %arg2: memref<1x1x16x10x10xbf16, #tpu.memory_space<vmem>>, %arg3: memref<8x144xbf16, #tpu.memory_space<vmem>>, %arg4: memref<8x1xf32, #tpu.memory_space<vmem>>, %arg5: memref<1x8x8x8xf32, #tpu.memory_space<vmem>>) attributes {dimension_semantics = [#tpu.dimension_semantics<parallel>, #tpu.dimension_semantics<parallel>], iteration_bounds = array<i64: 2, 1>, scalar_prefetch = 0 : i64, scratch_operands = 0 : i64, tpu.core_type = #tpu.core_type<tc>, window_params = [{transform_indices = @transform_0, window_bounds = array<i64: 1, 1, 16, 10, 10>}, {pipeline_mode = #tpu.pipeline_mode<synchronous>, transform_indices = @transform_1, window_bounds = array<i64: 8, 144>}, {pipeline_mode = #tpu.pipeline_mode<synchronous>, transform_indices = @transform_2, window_bounds = array<i64: 8, 1>}, {transform_indices = @transform_3, window_bounds = array<i64: 1, 8, 8, 8>}]} {
    %c0 = arith.constant 0 : index
    %c0_0 = arith.constant 0 : index
    %c0_1 = arith.constant 0 : index
    %c0_2 = arith.constant 0 : index
    %c0_3 = arith.constant 0 : index
    %0 = vector.load %arg2[%c0, %c0_0, %c0_1, %c0_2, %c0_3] : memref<1x1x16x10x10xbf16, #tpu.memory_space<vmem>>, vector<1x1x16x10x10xbf16>
    %1 = vector.shape_cast %0 : vector<1x1x16x10x10xbf16> to vector<16x10x10xbf16>
    %2 = vector.extract_strided_slice %1 {offsets = [0, 0, 0], sizes = [16, 8, 8], strides = [1, 1, 1]} : vector<16x10x10xbf16> to vector<16x8x8xbf16>
    %3 = vector.shape_cast %2 : vector<16x8x8xbf16> to vector<16x64xbf16>
    %4 = vector.extract_strided_slice %1 {offsets = [0, 0, 1], sizes = [16, 8, 8], strides = [1, 1, 1]} : vector<16x10x10xbf16> to vector<16x8x8xbf16>
    %5 = vector.shape_cast %4 : vector<16x8x8xbf16> to vector<16x64xbf16>
    %6 = vector.extract_strided_slice %1 {offsets = [0, 0, 2], sizes = [16, 8, 8], strides = [1, 1, 1]} : vector<16x10x10xbf16> to vector<16x8x8xbf16>
    %7 = vector.shape_cast %6 : vector<16x8x8xbf16> to vector<16x64xbf16>
    %8 = vector.extract_strided_slice %1 {offsets = [0, 1, 0], sizes = [16, 8, 8], strides = [1, 1, 1]} : vector<16x10x10xbf16> to vector<16x8x8xbf16>
    %9 = vector.shape_cast %8 : vector<16x8x8xbf16> to vector<16x64xbf16>
    %10 = vector.extract_strided_slice %1 {offsets = [0, 1, 1], sizes = [16, 8, 8], strides = [1, 1, 1]} : vector<16x10x10xbf16> to vector<16x8x8xbf16>
    %11 = vector.shape_cast %10 : vector<16x8x8xbf16> to vector<16x64xbf16>
    %12 = vector.extract_strided_slice %1 {offsets = [0, 1, 2], sizes = [16, 8, 8], strides = [1, 1, 1]} : vector<16x10x10xbf16> to vector<16x8x8xbf16>
    %13 = vector.shape_cast %12 : vector<16x8x8xbf16> to vector<16x64xbf16>
    %14 = vector.extract_strided_slice %1 {offsets = [0, 2, 0], sizes = [16, 8, 8], strides = [1, 1, 1]} : vector<16x10x10xbf16> to vector<16x8x8xbf16>
    %15 = vector.shape_cast %14 : vector<16x8x8xbf16> to vector<16x64xbf16>
    %16 = vector.extract_strided_slice %1 {offsets = [0, 2, 1], sizes = [16, 8, 8], strides = [1, 1, 1]} : vector<16x10x10xbf16> to vector<16x8x8xbf16>
    %17 = vector.shape_cast %16 : vector<16x8x8xbf16> to vector<16x64xbf16>
    %18 = vector.extract_strided_slice %1 {offsets = [0, 2, 2], sizes = [16, 8, 8], strides = [1, 1, 1]} : vector<16x10x10xbf16> to vector<16x8x8xbf16>
    %19 = vector.shape_cast %18 : vector<16x8x8xbf16> to vector<16x64xbf16>
    %20 = tpu.concatenate %3, %5, %7, %9, %11, %13, %15, %17, %19 in 0 : vector<16x64xbf16>, vector<16x64xbf16>, vector<16x64xbf16>, vector<16x64xbf16>, vector<16x64xbf16>, vector<16x64xbf16>, vector<16x64xbf16>, vector<16x64xbf16>, vector<16x64xbf16> -> vector<144x64xbf16>
    %c0_4 = arith.constant 0 : index
    %c0_5 = arith.constant 0 : index
    %21 = vector.load %arg3[%c0_4, %c0_5] : memref<8x144xbf16, #tpu.memory_space<vmem>>, vector<8x144xbf16>
    %cst = arith.constant dense<0.000000e+00> : vector<8x64xf32>
    %22 = tpu.matmul %21, %20, %cst {dimension_numbers = #tpu.dot_dimension_numbers<[1], [0], [0], [1], [0, 0, 1, 1], [], []>} : vector<8x144xbf16>, vector<144x64xbf16>, vector<8x64xf32> -> vector<8x64xf32>
    %c0_6 = arith.constant 0 : index
    %c0_7 = arith.constant 0 : index
    %23 = vector.load %arg4[%c0_6, %c0_7] : memref<8x1xf32, #tpu.memory_space<vmem>>, vector<8x1xf32>
    %24 = vector.broadcast %23 : vector<8x1xf32> to vector<8x64xf32>
    %25 = arith.addf %22, %24 : vector<8x64xf32>
    %cst_8 = arith.constant 0.000000e+00 : f32
    %26 = vector.broadcast %cst_8 : f32 to vector<8x64xf32>
    %27 = arith.cmpf ogt, %25, %26 : vector<8x64xf32>
    %cst_9 = arith.constant 0.00999999977 : f32
    %28 = vector.broadcast %cst_9 : f32 to vector<8x64xf32>
    %29 = arith.mulf %25, %28 : vector<8x64xf32>
    %30 = arith.select %27, %25, %29 : vector<8x64xi1>, vector<8x64xf32>
    %31 = vector.shape_cast %30 : vector<8x64xf32> to vector<8x8x8xf32>
    %c0_10 = arith.constant 0 : index
    %c0_11 = arith.constant 0 : index
    %c0_12 = arith.constant 0 : index
    %c0_13 = arith.constant 0 : index
    %32 = vector.load %arg5[%c0_10, %c0_11, %c0_12, %c0_13] : memref<1x8x8x8xf32, #tpu.memory_space<vmem>>, vector<1x8x8x8xf32>
    %33 = vector.shape_cast %32 : vector<1x8x8x8xf32> to vector<8x8x8xf32>
    %34 = vector.shape_cast %31 : vector<8x8x8xf32> to vector<1x8x8x8xf32>
    tpu.vector_store %arg5[%c0_10, %c0_11, %c0_12, %c0_13], %34 {strides = array<i32>} : memref<1x8x8x8xf32, #tpu.memory_space<vmem>>, vector<1x8x8x8xf32>,
    return
  }
  func.func @transform_0(%arg0: i32, %arg1: i32) -> (i32, i32, i32, i32, i32) {
    %c0_i32 = arith.constant 0 : i32
    %c0_i32_0 = arith.constant 0 : i32
    %c0_i32_1 = arith.constant 0 : i32
    %c0_i32_2 = arith.constant 0 : i32
    return %arg0, %arg1, %c0_i32, %c0_i32_0, %c0_i32_1 : i32, i32, i32, i32, i32
  }
  func.func @transform_1(%arg0: i32, %arg1: i32) -> (i32, i32) {
    %c0_i32 = arith.constant 0 : i32
    %c0_i32_0 = arith.constant 0 : i32
    %c0_i32_1 = arith.constant 0 : i32
    return %c0_i32, %c0_i32_0 : i32, i32
  }
  func.func @transform_2(%arg0: i32, %arg1: i32) -> (i32, i32) {
    %c0_i32 = arith.constant 0 : i32
    %c0_i32_0 = arith.constant 0 : i32
    %c0_i32_1 = arith.constant 0 : i32
    return %c0_i32, %c0_i32_0 : i32, i32
  }
  func.func @transform_3(%arg0: i32, %arg1: i32) -> (i32, i32, i32, i32) {
    %c0_i32 = arith.constant 0 : i32
    %c0_i32_0 = arith.constant 0 : i32
    %c0_i32_1 = arith.constant 0 : i32
    return %arg0, %c0_i32, %arg1, %c0_i32_0 : i32, i32, i32, i32
  }
}

</mosaic_0001>

<llo_original>
// kernel: tpu_custom_call.1
$region0: #{tpu_custom_call.1}
  #allocation0 [shape = 'u32[]', space=smem, size = 0x4, offset = 0x4, fixed_abs, tag = 'smem constant byte address 0x4 - core index']
  #allocation1 [shape = 'u32[144,128]{1,0:T(1,128)}', space=vmem, size = 0x12000, scoped, tag = 'internal scratch']
  %s0 = inlined_call_operand.vmem [shape: bf16[2,1,16,10,10], index: 0, kind: input, shape index: {}]
  %s1 = inlined_call_operand.vmem [shape: bf16[8,144], index: 1, kind: input, shape index: {}]
  %s2 = inlined_call_operand.vmem [shape: f32[8,1], index: 2, kind: input, shape index: {}]
  %s3 = inlined_call_operand.hbm [shape: f32[2,8,8,8], index: 3, kind: output, shape index: {}]
  %s4 = sld [smem:[#allocation0]]
  $region45: #{tpu_custom_call.1} parent=0
    _
  %s6 = ssub.s32 1, %s4
  %s7 = scalar_select 0, %s6, %s4
  $region1: #{tpu_custom_call.1} parent=0
    #allocation2 [shape = 'u8[65536]{0}', space=vmem, size = 0x10000, scoped, tag = 'output window, operand 0']
    #allocation3 [shape = 's32[2]{0}', space=sflag, size = 0x8, scoped, tag = 'scoped memory for tpu_custom_call.1']
    %8 = vsyncpa [#allocation3], 0
    %s9 = scalar_lea.sflag [#allocation3], 1
    %10 = vsyncpa %s9, 0
    loop: start=0, step=1, limit=4
    $region2: #{tpu_custom_call.1} parent=1 // loop_pre_header
      _
    $region3: #{tpu_custom_call.1} parent=1 // loop_header
      %s12 = sphi 0, %s16
      %p13 = scmp.ge.s32.totalorder %s12, 4
      %s19 = sphi 0, %s31
      %s20 = sphi 0, %s27
      %s21 = sphi 0, %s19
      %s22 = sphi 0, %s20
      %s23 = sphi 0, %s21
      %s24 = sphi 0, %s22
      %s36 = sphi 0, %s38
      %s39 = sphi 0, %s36
      %s40 = sphi 0, %s39
      %s56 = sphi 0, %s40
      %s60 = sphi 0, %s60
      %s62 = sphi 0, %s60
      %s63 = sphi 0, %s62
      %s77 = sphi 0, %s63
      %s81 = sphi 0, %s81
      %s83 = sphi 0, %s81
      %s84 = sphi 0, %s83
      %s98 = sphi 0, %s84
      %s106 = sphi 0, %s108
      %s109 = sphi 0, %s106
      %s110 = sphi 0, %s109
      %s126 = sphi 0, %s110
    $region4: #{tpu_custom_call.1} parent=1 // loop_header_branch
      %15 = sbr.rel (%p13) target = $region8
    $region5: #{tpu_custom_call.1} parent=1 // loop_body
      %s17 = ssub.s32 %s12, 1
      %s18 = ssub.s32 %s12, 2
      %s25 = sadd.s32 1, %s20
      %p26 = scmp.ge.s32.totalorder %s25, 1
      %s27 = scalar_select %p26, 0, %s25
      %s28 = sadd.s32 1, %s19
      %s29 = scalar_select %p26, %s28, %s19
      %p30 = scmp.ge.s32.totalorder %s29, 2
      %s31 = scalar_select %p30, 0, %s29
      %s32 = ssub.s32 %s19, %s31
      %s33 = ssub.s32 %s20, %s27
      %s34 = sor.u32 %s32, %s33
      %p35 = scmp.eq.s32.totalorder %s34, 0
      %s37 = sadd.s32 %s36, 1
      %s38 = scalar_select %p35, %s36, %s37
      %p41 = pneg %p35
      %p42 = scmp.eq.s32.totalorder %s12, 1
      %p43 = por %p41, %p42
      %p44 = scmp.ne.s32.totalorder %s36, %s39
      %p45 = scmp.eq.s32.totalorder %s12, 0
      %p46 = por %p44, %p45
      %p47 = scmp.ne.s32.totalorder %s36, %s39
      %p48 = scmp.eq.s32.totalorder %s17, 1
      %p49 = por %p47, %p48
      %p50 = scmp.ne.s32.totalorder %s39, %s40
      %p51 = scmp.eq.s32.totalorder %s17, 0
      %p52 = por %p50, %p51
      %p53 = scmp.ne.s32.totalorder %s39, %s40
      %p54 = scmp.eq.s32.totalorder %s18, 1
      %p55 = por %p53, %p54
      %p57 = scmp.ne.s32.totalorder %s40, %s56
      %p58 = scmp.eq.s32.totalorder %s18, 0
      %p59 = por %p57, %p58
      %s61 = sadd.s32 %s60, 1
      %p64 = scmp.eq.s32.totalorder %s12, 1
      %p65 = scmp.ne.s32.totalorder %s60, %s62
      %p66 = scmp.eq.s32.totalorder %s12, 0
      %p67 = por %p65, %p66
      %p68 = scmp.ne.s32.totalorder %s60, %s62
      %p69 = scmp.eq.s32.totalorder %s17, 1
      %p70 = por %p68, %p69
      %p71 = scmp.ne.s32.totalorder %s62, %s63
      %p72 = scmp.eq.s32.totalorder %s17, 0
      %p73 = por %p71, %p72
      %p74 = scmp.ne.s32.totalorder %s62, %s63
      %p75 = scmp.eq.s32.totalorder %s18, 1
      %p76 = por %p74, %p75
      %p78 = scmp.ne.s32.totalorder %s63, %s77
      %p79 = scmp.eq.s32.totalorder %s18, 0
      %p80 = por %p78, %p79
      %s82 = sadd.s32 %s81, 1
      %p85 = scmp.eq.s32.totalorder %s12, 1
      %p86 = scmp.ne.s32.totalorder %s81, %s83
      %p87 = scmp.eq.s32.totalorder %s12, 0
      %p88 = por %p86, %p87
      %p89 = scmp.ne.s32.totalorder %s81, %s83
      %p90 = scmp.eq.s32.totalorder %s17, 1
      %p91 = por %p89, %p90
      %p92 = scmp.ne.s32.totalorder %s83, %s84
      %p93 = scmp.eq.s32.totalorder %s17, 0
      %p94 = por %p92, %p93
      %p95 = scmp.ne.s32.totalorder %s83, %s84
      %p96 = scmp.eq.s32.totalorder %s18, 1
      %p97 = por %p95, %p96
      %p99 = scmp.ne.s32.totalorder %s84, %s98
      %p100 = scmp.eq.s32.totalorder %s18, 0
      %p101 = por %p99, %p100
      %s102 = ssub.s32 %s19, %s31
      %s103 = ssub.s32 %s20, %s27
      %s104 = sor.u32 %s102, %s103
      %p105 = scmp.eq.s32.totalorder %s104, 0
      %s107 = sadd.s32 %s106, 1
      %s108 = scalar_select %p105, %s106, %s107
      %p111 = pneg %p105
      %p112 = scmp.eq.s32.totalorder %s12, 1
      %p113 = por %p111, %p112
      %p114 = scmp.ne.s32.totalorder %s106, %s109
      %p115 = scmp.eq.s32.totalorder %s12, 0
      %p116 = por %p114, %p115
      %p117 = scmp.ne.s32.totalorder %s106, %s109
      %p118 = scmp.eq.s32.totalorder %s17, 1
      %p119 = por %p117, %p118
      %p120 = scmp.ne.s32.totalorder %s109, %s110
      %p121 = scmp.eq.s32.totalorder %s17, 0
      %p122 = por %p120, %p121
      %p123 = scmp.ne.s32.totalorder %s109, %s110
      %p124 = scmp.eq.s32.totalorder %s18, 1
      %p125 = por %p123, %p124
      %p127 = scmp.ne.s32.totalorder %s110, %s126
      %p128 = scmp.eq.s32.totalorder %s18, 0
      %p129 = por %p127, %p128
      %p130 = scmp.le.s32.totalorder 1, %s12
      %p131 = scmp.lt.s32.totalorder %s12, 3
      %p132 = pnand %p130, %p131
      %p133 = pneg %p132
      // Predicated region
      $region9: #{tpu_custom_call.1} parent=5 // pred_check
        _
      $region10: #{tpu_custom_call.1} parent=5 // pred_check_branch
        %135 = sbr.rel (%p132) target = $region12
      $region11: #{tpu_custom_call.1} parent=5 // pred_region
        %s136 = ssub.s32 %s12, 1
        // Predicated region
        $region13: #{tpu_custom_call.1} parent=11 // pred_check
          %p137 = pneg %p73
        $region14: #{tpu_custom_call.1} parent=11 // pred_check_branch
          %139 = sbr.rel (%p137) target = $region16
        $region15: #{tpu_custom_call.1} parent=11 // pred_region
          _
        $region16: #{tpu_custom_call.1} parent=11 // pred_fallthru
          _
        // Predicated region
        $region17: #{tpu_custom_call.1} parent=11 // pred_check
          %p140 = pneg %p94
        $region18: #{tpu_custom_call.1} parent=11 // pred_check_branch
          %142 = sbr.rel (%p140) target = $region20
        $region19: #{tpu_custom_call.1} parent=11 // pred_region
          _
        $region20: #{tpu_custom_call.1} parent=11 // pred_fallthru
          _
      $region12: #{tpu_custom_call.1} parent=5 // pred_fallthru
        _
      %p143 = scmp.lt.s32.totalorder %s12, 2
      // Predicated region
      $region21: #{tpu_custom_call.1} parent=5 // pred_check
        %p144 = pneg %p143
      $region22: #{tpu_custom_call.1} parent=5 // pred_check_branch
        %146 = sbr.rel (%p144) target = $region24
      $region23: #{tpu_custom_call.1} parent=5 // pred_region
        // Predicated region
        $region25: #{tpu_custom_call.1} parent=23 // pred_check
          %p147 = pneg %p46
        $region26: #{tpu_custom_call.1} parent=23 // pred_check_branch
          %149 = sbr.rel (%p147) target = $region28
        $region27: #{tpu_custom_call.1} parent=23 // pred_region
          %p150 = scmp.lt.s32.totalorder %s19, 1
          %s151 = scalar_select %p150, %s19, 1
          %p152 = scmp.lt.s32.totalorder %s20, 0
          %s153 = scalar_select %p152, %s20, 0
          %s154 = smul.addr %s153, 32
          %s155 = smul.addr %s151, 32
          %s156 = sadd.s32 %s154, %s155
          %s157 = smul.addr %s156, 4
          %s158 = scalar_lea.vmem %s0, %s157
        $region28: #{tpu_custom_call.1} parent=23 // pred_fallthru
          _
      $region24: #{tpu_custom_call.1} parent=5 // pred_fallthru
        _
      %p159 = scmp.le.s32.totalorder 1, %s12
      %p160 = scmp.lt.s32.totalorder %s12, 3
      %p161 = pnand %p159, %p160
      %p162 = pneg %p161
      // Predicated region
      $region29: #{tpu_custom_call.1} parent=5 // pred_check
        _
      $region30: #{tpu_custom_call.1} parent=5 // pred_check_branch
        %164 = sbr.rel (%p161) target = $region32
      $region31: #{tpu_custom_call.1} parent=5 // pred_region
        %s165 = ssub.s32 %s12, 1
        %p166 = scmp.lt.s32.totalorder %s21, 1
        %s167 = scalar_select %p166, %s21, 1
        %p168 = scmp.lt.s32.totalorder %s22, 0
        %s169 = scalar_select %p168, %s22, 0
        %s170 = smul.addr %s169, 32
        %s171 = smul.addr %s167, 32
        %s172 = sadd.s32 %s170, %s171
        %s173 = smul.addr %s172, 4
        %s174 = scalar_lea.vmem %s0, %s173
        %p175 = pneg %p52
        %p176 = pneg %p49
        %p177 = pneg %p73
        %p178 = pneg %p70
        %p179 = pneg %p94
        %p180 = pneg %p91
        %p181 = pneg %p122
        %p182 = pneg %p119
        %s183 = sand.u32 %s109, 1
        %s184 = scalar_lea.sflag [#allocation3], %s183
        %s185 = sand.u32 %s109, 1
        %s186 = smul.addr %s185, 64
        %s187 = scalar_lea.vmem [#allocation2], %s186
        %p188 = scmp.lt.s32.totalorder %s21, 1
        %s189 = scalar_select %p188, %s21, 1
        %p190 = scmp.lt.s32.totalorder %s22, 0
        %s191 = scalar_select %p190, %s22, 0
        %s192 = smul.addr %s191, 32
        %s193 = smul.addr %s189, 32
        %s194 = sadd.s32 %s192, %s193
        %s195 = smul.addr %s194, 4
        %s196 = scalar_lea.vmem %s0, %s195
        %v198 = vld [vmem:[%s196] sm:$0xf]
        %v199 = vld [vmem:[%s196 + $0x4] sm:$0x1]
        %v200 = vld [vmem:[%s196 + $0x8] sm:$0xf]
        %v201 = vld [vmem:[%s196 + $0xc] sm:$0x1]
        %v202 = vld [vmem:[%s196 + $0x10] sm:$0xf]
        %v203 = vld [vmem:[%s196 + $0x14] sm:$0x1]
        %v204 = vld [vmem:[%s196 + $0x18] sm:$0xf]
        %v205 = vld [vmem:[%s196 + $0x1c] sm:$0x1]
        %v206 = vld [vmem:[%s196 + $0x20] sm:$0xf]
        %v207 = vld [vmem:[%s196 + $0x24] sm:$0x1]
        %v208 = vld [vmem:[%s196 + $0x28] sm:$0xf]
        %v209 = vld [vmem:[%s196 + $0x2c] sm:$0x1]
        %v210 = vld [vmem:[%s196 + $0x30] sm:$0xf]
        %v211 = vld [vmem:[%s196 + $0x34] sm:$0x1]
        %v212 = vld [vmem:[%s196 + $0x38] sm:$0xf]
        %v213 = vld [vmem:[%s196 + $0x3c] sm:$0x1]
        %v214 = vld [vmem:[%s196 + $0x40] sm:$0xf]
        %v215 = vld [vmem:[%s196 + $0x44] sm:$0x1]
        %v216 = vld [vmem:[%s196 + $0x48] sm:$0xf]
        %v217 = vld [vmem:[%s196 + $0x4c] sm:$0x1]
        %v218 = vld [vmem:[%s196 + $0x50] sm:$0xf]
        %v219 = vld [vmem:[%s196 + $0x54] sm:$0x1]
        %v220 = vld [vmem:[%s196 + $0x58] sm:$0xf]
        %v221 = vld [vmem:[%s196 + $0x5c] sm:$0x1]
        %v222 = vld [vmem:[%s196 + $0x60] sm:$0xf]
        %v223 = vld [vmem:[%s196 + $0x64] sm:$0x1]
        %v224 = vld [vmem:[%s196 + $0x68] sm:$0xf]
        %v225 = vld [vmem:[%s196 + $0x6c] sm:$0x1]
        %v226 = vld [vmem:[%s196 + $0x70] sm:$0xf]
        %v227 = vld [vmem:[%s196 + $0x74] sm:$0x1]
        %v228 = vld [vmem:[%s196 + $0x78] sm:$0xf]
        %v229 = vld [vmem:[%s196 + $0x7c] sm:$0x1]
        %v230 = vcombine.low %v198, %v206
        %v232 = vunpack.c.l.s4 1983009808
        %v233 = vunpack.c.0.s8 %v232
        %v234 = vlaneseq
        %v235 = vshrl.u32 %v234, 7
        %v236 = vsub.s32 %v233, %v235
        %v237 = vrot.slane %v230, %v236
        %v238 = vcombine.low %v202, %v210
        %v240 = vunpack.c.l.s4 1983009808
        %v241 = vunpack.c.0.s8 %v240
        %v242 = vlaneseq
        %v243 = vshrl.u32 %v242, 7
        %v244 = vsub.s32 %v241, %v243
        %v245 = vrot.slane %v238, %v244
        %v246 = vcombine.low %v237, %v245
        %v247 = vcombine.high %v237, %v245
        %v249 = vunpack.c.l.s4 1934713408
        %v250 = vunpack.c.0.s8 %v249
        %v251 = vlaneseq
        %v252 = vshrl.u32 %v251, 7
        %v253 = vsub.s32 %v250, %v252
        %v254 = vrot.slane %v246, %v253
        %v256 = vunpack.c.l.s4 1934713408
        %v257 = vunpack.c.0.s8 %v256
        %v258 = vlaneseq
        %v259 = vshrl.u32 %v258, 7
        %v260 = vsub.s32 %v257, %v259
        %v261 = vrot.slane %v247, %v260
        %v262 = vcombine.high %v254, 0
        %v263 = vcombine.high %v261, 0
        %v264 = vcombine.low %v200, %v208
        %v266 = vunpack.c.l.s4 1983009808
        %v267 = vunpack.c.0.s8 %v266
        %v268 = vlaneseq
        %v269 = vshrl.u32 %v268, 7
        %v270 = vsub.s32 %v267, %v269
        %v271 = vrot.slane %v264, %v270
        %v272 = vcombine.low %v204, %v212
        %v274 = vunpack.c.l.s4 1983009808
        %v275 = vunpack.c.0.s8 %v274
        %v276 = vlaneseq
        %v277 = vshrl.u32 %v276, 7
        %v278 = vsub.s32 %v275, %v277
        %v279 = vrot.slane %v272, %v278
        %v280 = vcombine.low %v271, %v279
        %v281 = vcombine.high %v271, %v279
        %v283 = vunpack.c.l.s4 1934713408
        %v284 = vunpack.c.0.s8 %v283
        %v285 = vlaneseq
        %v286 = vshrl.u32 %v285, 7
        %v287 = vsub.s32 %v284, %v286
        %v288 = vrot.slane %v280, %v287
        %v290 = vunpack.c.l.s4 1934713408
        %v291 = vunpack.c.0.s8 %v290
        %v292 = vlaneseq
        %v293 = vshrl.u32 %v292, 7
        %v294 = vsub.s32 %v291, %v293
        %v295 = vrot.slane %v281, %v294
        %v296 = vcombine.high %v288, 0
        %v297 = vcombine.high %v295, 0
        %v298 = vcombine.low %v214, %v222
        %v300 = vunpack.c.l.s4 1983009808
        %v301 = vunpack.c.0.s8 %v300
        %v302 = vlaneseq
        %v303 = vshrl.u32 %v302, 7
        %v304 = vsub.s32 %v301, %v303
        %v305 = vrot.slane %v298, %v304
        %v306 = vcombine.low %v218, %v226
        %v308 = vunpack.c.l.s4 1983009808
        %v309 = vunpack.c.0.s8 %v308
        %v310 = vlaneseq
        %v311 = vshrl.u32 %v310, 7
        %v312 = vsub.s32 %v309, %v311
        %v313 = vrot.slane %v306, %v312
        %v314 = vcombine.low %v305, %v313
        %v315 = vcombine.high %v305, %v313
        %v317 = vunpack.c.l.s4 1934713408
        %v318 = vunpack.c.0.s8 %v317
        %v319 = vlaneseq
        %v320 = vshrl.u32 %v319, 7
        %v321 = vsub.s32 %v318, %v320
        %v322 = vrot.slane %v314, %v321
        %v324 = vunpack.c.l.s4 1934713408
        %v325 = vunpack.c.0.s8 %v324
        %v326 = vlaneseq
        %v327 = vshrl.u32 %v326, 7
        %v328 = vsub.s32 %v325, %v327
        %v329 = vrot.slane %v315, %v328
        %v330 = vcombine.high %v322, 0
        %v331 = vcombine.high %v329, 0
        %v332 = vcombine.low %v216, %v224
        %v334 = vunpack.c.l.s4 1983009808
        %v335 = vunpack.c.0.s8 %v334
        %v336 = vlaneseq
        %v337 = vshrl.u32 %v336, 7
        %v338 = vsub.s32 %v335, %v337
        %v339 = vrot.slane %v332, %v338
        %v340 = vcombine.low %v220, %v228
        %v342 = vunpack.c.l.s4 1983009808
        %v343 = vunpack.c.0.s8 %v342
        %v344 = vlaneseq
        %v345 = vshrl.u32 %v344, 7
        %v346 = vsub.s32 %v343, %v345
        %v347 = vrot.slane %v340, %v346
        %v348 = vcombine.low %v339, %v347
        %v349 = vcombine.high %v339, %v347
        %v351 = vunpack.c.l.s4 1934713408
        %v352 = vunpack.c.0.s8 %v351
        %v353 = vlaneseq
        %v354 = vshrl.u32 %v353, 7
        %v355 = vsub.s32 %v352, %v354
        %v356 = vrot.slane %v348, %v355
        %v358 = vunpack.c.l.s4 1934713408
        %v359 = vunpack.c.0.s8 %v358
        %v360 = vlaneseq
        %v361 = vshrl.u32 %v360, 7
        %v362 = vsub.s32 %v359, %v361
        %v363 = vrot.slane %v349, %v362
        %v364 = vcombine.high %v356, 0
        %v365 = vcombine.high %v363, 0
        %v368 = vpack.i.b16 %v288, %v254
        %v369 = vshrl.u32 %v254, 16
        %v370 = vshrl.u32 %v288, 16
        %v371 = vpack.i.b16 %v370, %v369
        %v374 = vpack.i.b16 %v296, %v262
        %v375 = vshrl.u32 %v262, 16
        %v376 = vshrl.u32 %v296, 16
        %v377 = vpack.i.b16 %v376, %v375
        %v380 = vpack.i.b16 %v295, %v261
        %v381 = vshrl.u32 %v261, 16
        %v382 = vshrl.u32 %v295, 16
        %v383 = vpack.i.b16 %v382, %v381
        %v386 = vpack.i.b16 %v297, %v263
        %v387 = vshrl.u32 %v263, 16
        %v388 = vshrl.u32 %v297, 16
        %v389 = vpack.i.b16 %v388, %v387
        %v392 = vpack.i.b16 %v356, %v322
        %v393 = vshrl.u32 %v322, 16
        %v394 = vshrl.u32 %v356, 16
        %v395 = vpack.i.b16 %v394, %v393
        %v398 = vpack.i.b16 %v364, %v330
        %v399 = vshrl.u32 %v330, 16
        %v400 = vshrl.u32 %v364, 16
        %v401 = vpack.i.b16 %v400, %v399
        %v404 = vpack.i.b16 %v363, %v329
        %v405 = vshrl.u32 %v329, 16
        %v406 = vshrl.u32 %v363, 16
        %v407 = vpack.i.b16 %v406, %v405
        %v410 = vpack.i.b16 %v365, %v331
        %v411 = vshrl.u32 %v331, 16
        %v412 = vshrl.u32 %v365, 16
        %v413 = vpack.i.b16 %v412, %v411
        %v414 = vunpack.c.l.b16 %v368
        %v415 = vunpack.c.l.b16 %v392
        %v416 = vpack.c.b16 %v415, %v414
        %v417 = vunpack.c.l.b16 %v371
        %v418 = vunpack.c.l.b16 %v395
        %v419 = vpack.c.b16 %v418, %v417
        %420 = vrot.lane.b32.xlu0 %v419, 8
        %v421 = vpop.permute.xlu0 %420
        %v422 = vunpack.c.l.b16 %v374
        %v423 = vunpack.c.l.b16 %v398
        %v424 = vpack.c.b16 %v423, %v422
        %425 = vrot.lane.b32.xlu0 %v424, 16
        %v426 = vpop.permute.xlu0 %425
        %v427 = vunpack.c.l.b16 %v377
        %v428 = vunpack.c.l.b16 %v401
        %v429 = vpack.c.b16 %v428, %v427
        %430 = vrot.lane.b32.xlu0 %v429, 24
        %v431 = vpop.permute.xlu0 %430
        %v432 = vunpack.c.l.b16 %v380
        %v433 = vunpack.c.l.b16 %v404
        %v434 = vpack.c.b16 %v433, %v432
        %435 = vrot.lane.b32.xlu0 %v434, 32
        %v436 = vpop.permute.xlu0 %435
        %v437 = vunpack.c.l.b16 %v383
        %v438 = vunpack.c.l.b16 %v407
        %v439 = vpack.c.b16 %v438, %v437
        %440 = vrot.lane.b32.xlu0 %v439, 40
        %v441 = vpop.permute.xlu0 %440
        %v442 = vunpack.c.l.b16 %v386
        %v443 = vunpack.c.l.b16 %v410
        %v444 = vpack.c.b16 %v443, %v442
        %445 = vrot.lane.b32.xlu0 %v444, 48
        %v446 = vpop.permute.xlu0 %445
        %v447 = vunpack.c.l.b16 %v389
        %v448 = vunpack.c.l.b16 %v413
        %v449 = vpack.c.b16 %v448, %v447
        %450 = vrot.lane.b32.xlu0 %v449, 56
        %v451 = vpop.permute.xlu0 %450
        %vm452 = vcmask 64512
        %v455 = vsel %vm452, %v416, %v421
        %vm456 = vcmask 130048
        %v458 = vsel %vm456, %v455, %v426
        %vm459 = vcmask 195584
        %v461 = vsel %vm459, %v458, %v431
        %vm462 = vcmask 261120
        %v464 = vsel %vm462, %v461, %v436
        %vm465 = vcmask 326656
        %v467 = vsel %vm465, %v464, %v441
        %vm468 = vcmask 392192
        %v470 = vsel %vm468, %v467, %v446
        %vm471 = vcmask 457728
        %v473 = vsel %vm471, %v470, %v451
        %491 = vrot.lane.b32.xlu0 %v198, 127
        %v492 = vpop.permute.xlu0 %491
        %493 = vrot.lane.b32.xlu0 %v200, 127
        %v494 = vpop.permute.xlu0 %493
        %495 = vrot.lane.b32.xlu0 %v202, 127
        %v496 = vpop.permute.xlu0 %495
        %497 = vrot.lane.b32.xlu0 %v204, 127
        %v498 = vpop.permute.xlu0 %497
        %499 = vrot.lane.b32.xlu0 %v206, 127
        %v500 = vpop.permute.xlu0 %499
        %501 = vrot.lane.b32.xlu0 %v208, 127
        %v502 = vpop.permute.xlu0 %501
        %503 = vrot.lane.b32.xlu0 %v210, 127
        %v504 = vpop.permute.xlu0 %503
        %505 = vrot.lane.b32.xlu0 %v212, 127
        %v506 = vpop.permute.xlu0 %505
        %507 = vrot.lane.b32.xlu0 %v214, 127
        %v508 = vpop.permute.xlu0 %507
        %509 = vrot.lane.b32.xlu0 %v216, 127
        %v510 = vpop.permute.xlu0 %509
        %511 = vrot.lane.b32.xlu0 %v218, 127
        %v512 = vpop.permute.xlu0 %511
        %513 = vrot.lane.b32.xlu0 %v220, 127
        %v514 = vpop.permute.xlu0 %513
        %515 = vrot.lane.b32.xlu0 %v222, 127
        %v516 = vpop.permute.xlu0 %515
        %517 = vrot.lane.b32.xlu0 %v224, 127
        %v518 = vpop.permute.xlu0 %517
        %519 = vrot.lane.b32.xlu0 %v226, 127
        %v520 = vpop.permute.xlu0 %519
        %521 = vrot.lane.b32.xlu0 %v228, 127
        %v522 = vpop.permute.xlu0 %521
        %v539 = vcombine.low %v492, %v500
        %v541 = vunpack.c.l.s4 1983009808
        %v542 = vunpack.c.0.s8 %v541
        %v543 = vlaneseq
        %v544 = vshrl.u32 %v543, 7
        %v545 = vsub.s32 %v542, %v544
        %v546 = vrot.slane %v539, %v545
        %v547 = vcombine.low %v496, %v504
        %v549 = vunpack.c.l.s4 1983009808
        %v550 = vunpack.c.0.s8 %v549
        %v551 = vlaneseq
        %v552 = vshrl.u32 %v551, 7
        %v553 = vsub.s32 %v550, %v552
        %v554 = vrot.slane %v547, %v553
        %v555 = vcombine.low %v546, %v554
        %v556 = vcombine.high %v546, %v554
        %v558 = vunpack.c.l.s4 1934713408
        %v559 = vunpack.c.0.s8 %v558
        %v560 = vlaneseq
        %v561 = vshrl.u32 %v560, 7
        %v562 = vsub.s32 %v559, %v561
        %v563 = vrot.slane %v555, %v562
        %v565 = vunpack.c.l.s4 1934713408
        %v566 = vunpack.c.0.s8 %v565
        %v567 = vlaneseq
        %v568 = vshrl.u32 %v567, 7
        %v569 = vsub.s32 %v566, %v568
        %v570 = vrot.slane %v556, %v569
        %v571 = vcombine.high %v563, 0
        %v572 = vcombine.high %v570, 0
        %v573 = vcombine.low %v494, %v502
        %v575 = vunpack.c.l.s4 1983009808
        %v576 = vunpack.c.0.s8 %v575
        %v577 = vlaneseq
        %v578 = vshrl.u32 %v577, 7
        %v579 = vsub.s32 %v576, %v578
        %v580 = vrot.slane %v573, %v579
        %v581 = vcombine.low %v498, %v506
        %v583 = vunpack.c.l.s4 1983009808
        %v584 = vunpack.c.0.s8 %v583
        %v585 = vlaneseq
        %v586 = vshrl.u32 %v585, 7
        %v587 = vsub.s32 %v584, %v586
        %v588 = vrot.slane %v581, %v587
        %v589 = vcombine.low %v580, %v588
        %v590 = vcombine.high %v580, %v588
        %v592 = vunpack.c.l.s4 1934713408
        %v593 = vunpack.c.0.s8 %v592
        %v594 = vlaneseq
        %v595 = vshrl.u32 %v594, 7
        %v596 = vsub.s32 %v593, %v595
        %v597 = vrot.slane %v589, %v596
        %v599 = vunpack.c.l.s4 1934713408
        %v600 = vunpack.c.0.s8 %v599
        %v601 = vlaneseq
        %v602 = vshrl.u32 %v601, 7
        %v603 = vsub.s32 %v600, %v602
        %v604 = vrot.slane %v590, %v603
        %v605 = vcombine.high %v597, 0
        %v606 = vcombine.high %v604, 0
        %v607 = vcombine.low %v508, %v516
        %v609 = vunpack.c.l.s4 1983009808
        %v610 = vunpack.c.0.s8 %v609
        %v611 = vlaneseq
        %v612 = vshrl.u32 %v611, 7
        %v613 = vsub.s32 %v610, %v612
        %v614 = vrot.slane %v607, %v613
        %v615 = vcombine.low %v512, %v520
        %v617 = vunpack.c.l.s4 1983009808
        %v618 = vunpack.c.0.s8 %v617
        %v619 = vlaneseq
        %v620 = vshrl.u32 %v619, 7
        %v621 = vsub.s32 %v618, %v620
        %v622 = vrot.slane %v615, %v621
        %v623 = vcombine.low %v614, %v622
        %v624 = vcombine.high %v614, %v622
        %v626 = vunpack.c.l.s4 1934713408
        %v627 = vunpack.c.0.s8 %v626
        %v628 = vlaneseq
        %v629 = vshrl.u32 %v628, 7
        %v630 = vsub.s32 %v627, %v629
        %v631 = vrot.slane %v623, %v630
        %v633 = vunpack.c.l.s4 1934713408
        %v634 = vunpack.c.0.s8 %v633
        %v635 = vlaneseq
        %v636 = vshrl.u32 %v635, 7
        %v637 = vsub.s32 %v634, %v636
        %v638 = vrot.slane %v624, %v637
        %v639 = vcombine.high %v631, 0
        %v640 = vcombine.high %v638, 0
        %v641 = vcombine.low %v510, %v518
        %v643 = vunpack.c.l.s4 1983009808
        %v644 = vunpack.c.0.s8 %v643
        %v645 = vlaneseq
        %v646 = vshrl.u32 %v645, 7
        %v647 = vsub.s32 %v644, %v646
        %v648 = vrot.slane %v641, %v647
        %v649 = vcombine.low %v514, %v522
        %v651 = vunpack.c.l.s4 1983009808
        %v652 = vunpack.c.0.s8 %v651
        %v653 = vlaneseq
        %v654 = vshrl.u32 %v653, 7
        %v655 = vsub.s32 %v652, %v654
        %v656 = vrot.slane %v649, %v655
        %v657 = vcombine.low %v648, %v656
        %v658 = vcombine.high %v648, %v656
        %v660 = vunpack.c.l.s4 1934713408
        %v661 = vunpack.c.0.s8 %v660
        %v662 = vlaneseq
        %v663 = vshrl.u32 %v662, 7
        %v664 = vsub.s32 %v661, %v663
        %v665 = vrot.slane %v657, %v664
        %v667 = vunpack.c.l.s4 1934713408
        %v668 = vunpack.c.0.s8 %v667
        %v669 = vlaneseq
        %v670 = vshrl.u32 %v669, 7
        %v671 = vsub.s32 %v668, %v670
        %v672 = vrot.slane %v658, %v671
        %v673 = vcombine.high %v665, 0
        %v674 = vcombine.high %v672, 0
        %v677 = vpack.i.b16 %v597, %v563
        %v678 = vshrl.u32 %v563, 16
        %v679 = vshrl.u32 %v597, 16
        %v680 = vpack.i.b16 %v679, %v678
        %v683 = vpack.i.b16 %v605, %v571
        %v684 = vshrl.u32 %v571, 16
        %v685 = vshrl.u32 %v605, 16
        %v686 = vpack.i.b16 %v685, %v684
        %v689 = vpack.i.b16 %v604, %v570
        %v690 = vshrl.u32 %v570, 16
        %v691 = vshrl.u32 %v604, 16
        %v692 = vpack.i.b16 %v691, %v690
        %v695 = vpack.i.b16 %v606, %v572
        %v696 = vshrl.u32 %v572, 16
        %v697 = vshrl.u32 %v606, 16
        %v698 = vpack.i.b16 %v697, %v696
        %v701 = vpack.i.b16 %v665, %v631
        %v702 = vshrl.u32 %v631, 16
        %v703 = vshrl.u32 %v665, 16
        %v704 = vpack.i.b16 %v703, %v702
        %v707 = vpack.i.b16 %v673, %v639
        %v708 = vshrl.u32 %v639, 16
        %v709 = vshrl.u32 %v673, 16
        %v710 = vpack.i.b16 %v709, %v708
        %v713 = vpack.i.b16 %v672, %v638
        %v714 = vshrl.u32 %v638, 16
        %v715 = vshrl.u32 %v672, 16
        %v716 = vpack.i.b16 %v715, %v714
        %v719 = vpack.i.b16 %v674, %v640
        %v720 = vshrl.u32 %v640, 16
        %v721 = vshrl.u32 %v674, 16
        %v722 = vpack.i.b16 %v721, %v720
        %v723 = vunpack.c.l.b16 %v677
        %v724 = vunpack.c.l.b16 %v701
        %v725 = vpack.c.b16 %v724, %v723
        %v726 = vunpack.c.l.b16 %v680
        %v727 = vunpack.c.l.b16 %v704
        %v728 = vpack.c.b16 %v727, %v726
        %729 = vrot.lane.b32.xlu0 %v728, 8
        %v730 = vpop.permute.xlu0 %729
        %v731 = vunpack.c.l.b16 %v683
        %v732 = vunpack.c.l.b16 %v707
        %v733 = vpack.c.b16 %v732, %v731
        %734 = vrot.lane.b32.xlu0 %v733, 16
        %v735 = vpop.permute.xlu0 %734
        %v736 = vunpack.c.l.b16 %v686
        %v737 = vunpack.c.l.b16 %v710
        %v738 = vpack.c.b16 %v737, %v736
        %739 = vrot.lane.b32.xlu0 %v738, 24
        %v740 = vpop.permute.xlu0 %739
        %v741 = vunpack.c.l.b16 %v689
        %v742 = vunpack.c.l.b16 %v713
        %v743 = vpack.c.b16 %v742, %v741
        %744 = vrot.lane.b32.xlu0 %v743, 32
        %v745 = vpop.permute.xlu0 %744
        %v746 = vunpack.c.l.b16 %v692
        %v747 = vunpack.c.l.b16 %v716
        %v748 = vpack.c.b16 %v747, %v746
        %749 = vrot.lane.b32.xlu0 %v748, 40
        %v750 = vpop.permute.xlu0 %749
        %v751 = vunpack.c.l.b16 %v695
        %v752 = vunpack.c.l.b16 %v719
        %v753 = vpack.c.b16 %v752, %v751
        %754 = vrot.lane.b32.xlu0 %v753, 48
        %v755 = vpop.permute.xlu0 %754
        %v756 = vunpack.c.l.b16 %v698
        %v757 = vunpack.c.l.b16 %v722
        %v758 = vpack.c.b16 %v757, %v756
        %759 = vrot.lane.b32.xlu0 %v758, 56
        %v760 = vpop.permute.xlu0 %759
        %v763 = vsel %vm452, %v725, %v730
        %v765 = vsel %vm456, %v763, %v735
        %v767 = vsel %vm459, %v765, %v740
        %v769 = vsel %vm462, %v767, %v745
        %v771 = vsel %vm465, %v769, %v750
        %v773 = vsel %vm468, %v771, %v755
        %v775 = vsel %vm471, %v773, %v760
        %777 = vrot.lane.b32.xlu0 %v198, 126
        %v778 = vpop.permute.xlu0 %777
        %779 = vrot.lane.b32.xlu0 %v200, 126
        %v780 = vpop.permute.xlu0 %779
        %781 = vrot.lane.b32.xlu0 %v202, 126
        %v782 = vpop.permute.xlu0 %781
        %783 = vrot.lane.b32.xlu0 %v204, 126
        %v784 = vpop.permute.xlu0 %783
        %785 = vrot.lane.b32.xlu0 %v206, 126
        %v786 = vpop.permute.xlu0 %785
        %787 = vrot.lane.b32.xlu0 %v208, 126
        %v788 = vpop.permute.xlu0 %787
        %789 = vrot.lane.b32.xlu0 %v210, 126
        %v790 = vpop.permute.xlu0 %789
        %791 = vrot.lane.b32.xlu0 %v212, 126
        %v792 = vpop.permute.xlu0 %791
        %793 = vrot.lane.b32.xlu0 %v214, 126
        %v794 = vpop.permute.xlu0 %793
        %795 = vrot.lane.b32.xlu0 %v216, 126
        %v796 = vpop.permute.xlu0 %795
        %797 = vrot.lane.b32.xlu0 %v218, 126
        %v798 = vpop.permute.xlu0 %797
        %799 = vrot.lane.b32.xlu0 %v220, 126
        %v800 = vpop.permute.xlu0 %799
        %801 = vrot.lane.b32.xlu0 %v222, 126
        %v802 = vpop.permute.xlu0 %801
        %803 = vrot.lane.b32.xlu0 %v224, 126
        %v804 = vpop.permute.xlu0 %803
        %805 = vrot.lane.b32.xlu0 %v226, 126
        %v806 = vpop.permute.xlu0 %805
        %807 = vrot.lane.b32.xlu0 %v228, 126
        %v808 = vpop.permute.xlu0 %807
        %v825 = vcombine.low %v778, %v786
        %v827 = vunpack.c.l.s4 1983009808
        %v828 = vunpack.c.0.s8 %v827
        %v829 = vlaneseq
        %v830 = vshrl.u32 %v829, 7
        %v831 = vsub.s32 %v828, %v830
        %v832 = vrot.slane %v825, %v831
        %v833 = vcombine.low %v782, %v790
        %v835 = vunpack.c.l.s4 1983009808
        %v836 = vunpack.c.0.s8 %v835
        %v837 = vlaneseq
        %v838 = vshrl.u32 %v837, 7
        %v839 = vsub.s32 %v836, %v838
        %v840 = vrot.slane %v833, %v839
        %v841 = vcombine.low %v832, %v840
        %v842 = vcombine.high %v832, %v840
        %v844 = vunpack.c.l.s4 1934713408
        %v845 = vunpack.c.0.s8 %v844
        %v846 = vlaneseq
        %v847 = vshrl.u32 %v846, 7
        %v848 = vsub.s32 %v845, %v847
        %v849 = vrot.slane %v841, %v848
        %v851 = vunpack.c.l.s4 1934713408
        %v852 = vunpack.c.0.s8 %v851
        %v853 = vlaneseq
        %v854 = vshrl.u32 %v853, 7
        %v855 = vsub.s32 %v852, %v854
        %v856 = vrot.slane %v842, %v855
        %v857 = vcombine.high %v849, 0
        %v858 = vcombine.high %v856, 0
        %v859 = vcombine.low %v780, %v788
        %v861 = vunpack.c.l.s4 1983009808
        %v862 = vunpack.c.0.s8 %v861
        %v863 = vlaneseq
        %v864 = vshrl.u32 %v863, 7
        %v865 = vsub.s32 %v862, %v864
        %v866 = vrot.slane %v859, %v865
        %v867 = vcombine.low %v784, %v792
        %v869 = vunpack.c.l.s4 1983009808
        %v870 = vunpack.c.0.s8 %v869
        %v871 = vlaneseq
        %v872 = vshrl.u32 %v871, 7
        %v873 = vsub.s32 %v870, %v872
        %v874 = vrot.slane %v867, %v873
        %v875 = vcombine.low %v866, %v874
        %v876 = vcombine.high %v866, %v874
        %v878 = vunpack.c.l.s4 1934713408
        %v879 = vunpack.c.0.s8 %v878
        %v880 = vlaneseq
        %v881 = vshrl.u32 %v880, 7
        %v882 = vsub.s32 %v879, %v881
        %v883 = vrot.slane %v875, %v882
        %v885 = vunpack.c.l.s4 1934713408
        %v886 = vunpack.c.0.s8 %v885
        %v887 = vlaneseq
        %v888 = vshrl.u32 %v887, 7
        %v889 = vsub.s32 %v886, %v888
        %v890 = vrot.slane %v876, %v889
        %v891 = vcombine.high %v883, 0
        %v892 = vcombine.high %v890, 0
        %v893 = vcombine.low %v794, %v802
        %v895 = vunpack.c.l.s4 1983009808
        %v896 = vunpack.c.0.s8 %v895
        %v897 = vlaneseq
        %v898 = vshrl.u32 %v897, 7
        %v899 = vsub.s32 %v896, %v898
        %v900 = vrot.slane %v893, %v899
        %v901 = vcombine.low %v798, %v806
        %v903 = vunpack.c.l.s4 1983009808
        %v904 = vunpack.c.0.s8 %v903
        %v905 = vlaneseq
        %v906 = vshrl.u32 %v905, 7
        %v907 = vsub.s32 %v904, %v906
        %v908 = vrot.slane %v901, %v907
        %v909 = vcombine.low %v900, %v908
        %v910 = vcombine.high %v900, %v908
        %v912 = vunpack.c.l.s4 1934713408
        %v913 = vunpack.c.0.s8 %v912
        %v914 = vlaneseq
        %v915 = vshrl.u32 %v914, 7
        %v916 = vsub.s32 %v913, %v915
        %v917 = vrot.slane %v909, %v916
        %v919 = vunpack.c.l.s4 1934713408
        %v920 = vunpack.c.0.s8 %v919
        %v921 = vlaneseq
        %v922 = vshrl.u32 %v921, 7
        %v923 = vsub.s32 %v920, %v922
        %v924 = vrot.slane %v910, %v923
        %v925 = vcombine.high %v917, 0
        %v926 = vcombine.high %v924, 0
        %v927 = vcombine.low %v796, %v804
        %v929 = vunpack.c.l.s4 1983009808
        %v930 = vunpack.c.0.s8 %v929
        %v931 = vlaneseq
        %v932 = vshrl.u32 %v931, 7
        %v933 = vsub.s32 %v930, %v932
        %v934 = vrot.slane %v927, %v933
        %v935 = vcombine.low %v800, %v808
        %v937 = vunpack.c.l.s4 1983009808
        %v938 = vunpack.c.0.s8 %v937
        %v939 = vlaneseq
        %v940 = vshrl.u32 %v939, 7
        %v941 = vsub.s32 %v938, %v940
        %v942 = vrot.slane %v935, %v941
        %v943 = vcombine.low %v934, %v942
        %v944 = vcombine.high %v934, %v942
        %v946 = vunpack.c.l.s4 1934713408
        %v947 = vunpack.c.0.s8 %v946
        %v948 = vlaneseq
        %v949 = vshrl.u32 %v948, 7
        %v950 = vsub.s32 %v947, %v949
        %v951 = vrot.slane %v943, %v950
        %v953 = vunpack.c.l.s4 1934713408
        %v954 = vunpack.c.0.s8 %v953
        %v955 = vlaneseq
        %v956 = vshrl.u32 %v955, 7
        %v957 = vsub.s32 %v954, %v956
        %v958 = vrot.slane %v944, %v957
        %v959 = vcombine.high %v951, 0
        %v960 = vcombine.high %v958, 0
        %v963 = vpack.i.b16 %v883, %v849
        %v964 = vshrl.u32 %v849, 16
        %v965 = vshrl.u32 %v883, 16
        %v966 = vpack.i.b16 %v965, %v964
        %v969 = vpack.i.b16 %v891, %v857
        %v970 = vshrl.u32 %v857, 16
        %v971 = vshrl.u32 %v891, 16
        %v972 = vpack.i.b16 %v971, %v970
        %v975 = vpack.i.b16 %v890, %v856
        %v976 = vshrl.u32 %v856, 16
        %v977 = vshrl.u32 %v890, 16
        %v978 = vpack.i.b16 %v977, %v976
        %v981 = vpack.i.b16 %v892, %v858
        %v982 = vshrl.u32 %v858, 16
        %v983 = vshrl.u32 %v892, 16
        %v984 = vpack.i.b16 %v983, %v982
        %v987 = vpack.i.b16 %v951, %v917
        %v988 = vshrl.u32 %v917, 16
        %v989 = vshrl.u32 %v951, 16
        %v990 = vpack.i.b16 %v989, %v988
        %v993 = vpack.i.b16 %v959, %v925
        %v994 = vshrl.u32 %v925, 16
        %v995 = vshrl.u32 %v959, 16
        %v996 = vpack.i.b16 %v995, %v994
        %v999 = vpack.i.b16 %v958, %v924
        %v1000 = vshrl.u32 %v924, 16
        %v1001 = vshrl.u32 %v958, 16
        %v1002 = vpack.i.b16 %v1001, %v1000
        %v1005 = vpack.i.b16 %v960, %v926
        %v1006 = vshrl.u32 %v926, 16
        %v1007 = vshrl.u32 %v960, 16
        %v1008 = vpack.i.b16 %v1007, %v1006
        %v1009 = vunpack.c.l.b16 %v963
        %v1010 = vunpack.c.l.b16 %v987
        %v1011 = vpack.c.b16 %v1010, %v1009
        %v1012 = vunpack.c.l.b16 %v966
        %v1013 = vunpack.c.l.b16 %v990
        %v1014 = vpack.c.b16 %v1013, %v1012
        %1015 = vrot.lane.b32.xlu0 %v1014, 8
        %v1016 = vpop.permute.xlu0 %1015
        %v1017 = vunpack.c.l.b16 %v969
        %v1018 = vunpack.c.l.b16 %v993
        %v1019 = vpack.c.b16 %v1018, %v1017
        %1020 = vrot.lane.b32.xlu0 %v1019, 16
        %v1021 = vpop.permute.xlu0 %1020
        %v1022 = vunpack.c.l.b16 %v972
        %v1023 = vunpack.c.l.b16 %v996
        %v1024 = vpack.c.b16 %v1023, %v1022
        %1025 = vrot.lane.b32.xlu0 %v1024, 24
        %v1026 = vpop.permute.xlu0 %1025
        %v1027 = vunpack.c.l.b16 %v975
        %v1028 = vunpack.c.l.b16 %v999
        %v1029 = vpack.c.b16 %v1028, %v1027
        %1030 = vrot.lane.b32.xlu0 %v1029, 32
        %v1031 = vpop.permute.xlu0 %1030
        %v1032 = vunpack.c.l.b16 %v978
        %v1033 = vunpack.c.l.b16 %v1002
        %v1034 = vpack.c.b16 %v1033, %v1032
        %1035 = vrot.lane.b32.xlu0 %v1034, 40
        %v1036 = vpop.permute.xlu0 %1035
        %v1037 = vunpack.c.l.b16 %v981
        %v1038 = vunpack.c.l.b16 %v1005
        %v1039 = vpack.c.b16 %v1038, %v1037
        %1040 = vrot.lane.b32.xlu0 %v1039, 48
        %v1041 = vpop.permute.xlu0 %1040
        %v1042 = vunpack.c.l.b16 %v984
        %v1043 = vunpack.c.l.b16 %v1008
        %v1044 = vpack.c.b16 %v1043, %v1042
        %1045 = vrot.lane.b32.xlu0 %v1044, 56
        %v1046 = vpop.permute.xlu0 %1045
        %v1049 = vsel %vm452, %v1011, %v1016
        %v1051 = vsel %vm456, %v1049, %v1021
        %v1053 = vsel %vm459, %v1051, %v1026
        %v1055 = vsel %vm462, %v1053, %v1031
        %v1057 = vsel %vm465, %v1055, %v1036
        %v1059 = vsel %vm468, %v1057, %v1041
        %v1061 = vsel %vm471, %v1059, %v1046
        %vm1063 = vsmask.f32 3328
        %vm1064 = vsmask.f32 7440
        %vm1065 = vmor %vm1063, %vm1064
        %v1067 = vshrl.u32 %v198, 16
        %v1069 = vrot.slane %v1067, 4
        %v1070 = vshll.u32 %v198, 16
        %v1072 = vrot.slane %v1070, 5
        %v1073 = vor.u32 %v1069, %v1072
        %v1074 = vrot.slane %v1073, 4
        %v1076 = vshll.u32 %v199, 16
        %v1078 = vrot.slane %v1076, 5
        %v1079 = vsel %vm1065, %v1074, %v1078
        %v1081 = vshrl.u32 %v200, 16
        %v1083 = vrot.slane %v1081, 4
        %v1084 = vshll.u32 %v200, 16
        %v1086 = vrot.slane %v1084, 5
        %v1087 = vor.u32 %v1083, %v1086
        %v1088 = vrot.slane %v1087, 4
        %v1090 = vshll.u32 %v201, 16
        %v1092 = vrot.slane %v1090, 5
        %v1093 = vsel %vm1065, %v1088, %v1092
        %v1095 = vshrl.u32 %v202, 16
        %v1097 = vrot.slane %v1095, 4
        %v1098 = vshll.u32 %v202, 16
        %v1100 = vrot.slane %v1098, 5
        %v1101 = vor.u32 %v1097, %v1100
        %v1102 = vrot.slane %v1101, 4
        %v1104 = vshll.u32 %v203, 16
        %v1106 = vrot.slane %v1104, 5
        %v1107 = vsel %vm1065, %v1102, %v1106
        %v1109 = vshrl.u32 %v204, 16
        %v1111 = vrot.slane %v1109, 4
        %v1112 = vshll.u32 %v204, 16
        %v1114 = vrot.slane %v1112, 5
        %v1115 = vor.u32 %v1111, %v1114
        %v1116 = vrot.slane %v1115, 4
        %v1118 = vshll.u32 %v205, 16
        %v1120 = vrot.slane %v1118, 5
        %v1121 = vsel %vm1065, %v1116, %v1120
        %v1123 = vshrl.u32 %v206, 16
        %v1125 = vrot.slane %v1123, 4
        %v1126 = vshll.u32 %v206, 16
        %v1128 = vrot.slane %v1126, 5
        %v1129 = vor.u32 %v1125, %v1128
        %v1130 = vrot.slane %v1129, 4
        %v1132 = vshll.u32 %v207, 16
        %v1134 = vrot.slane %v1132, 5
        %v1135 = vsel %vm1065, %v1130, %v1134
        %v1137 = vshrl.u32 %v208, 16
        %v1139 = vrot.slane %v1137, 4
        %v1140 = vshll.u32 %v208, 16
        %v1142 = vrot.slane %v1140, 5
        %v1143 = vor.u32 %v1139, %v1142
        %v1144 = vrot.slane %v1143, 4
        %v1146 = vshll.u32 %v209, 16
        %v1148 = vrot.slane %v1146, 5
        %v1149 = vsel %vm1065, %v1144, %v1148
        %v1151 = vshrl.u32 %v210, 16
        %v1153 = vrot.slane %v1151, 4
        %v1154 = vshll.u32 %v210, 16
        %v1156 = vrot.slane %v1154, 5
        %v1157 = vor.u32 %v1153, %v1156
        %v1158 = vrot.slane %v1157, 4
        %v1160 = vshll.u32 %v211, 16
        %v1162 = vrot.slane %v1160, 5
        %v1163 = vsel %vm1065, %v1158, %v1162
        %v1165 = vshrl.u32 %v212, 16
        %v1167 = vrot.slane %v1165, 4
        %v1168 = vshll.u32 %v212, 16
        %v1170 = vrot.slane %v1168, 5
        %v1171 = vor.u32 %v1167, %v1170
        %v1172 = vrot.slane %v1171, 4
        %v1174 = vshll.u32 %v213, 16
        %v1176 = vrot.slane %v1174, 5
        %v1177 = vsel %vm1065, %v1172, %v1176
        %v1179 = vshrl.u32 %v214, 16
        %v1181 = vrot.slane %v1179, 4
        %v1182 = vshll.u32 %v214, 16
        %v1184 = vrot.slane %v1182, 5
        %v1185 = vor.u32 %v1181, %v1184
        %v1186 = vrot.slane %v1185, 4
        %v1188 = vshll.u32 %v215, 16
        %v1190 = vrot.slane %v1188, 5
        %v1191 = vsel %vm1065, %v1186, %v1190
        %v1193 = vshrl.u32 %v216, 16
        %v1195 = vrot.slane %v1193, 4
        %v1196 = vshll.u32 %v216, 16
        %v1198 = vrot.slane %v1196, 5
        %v1199 = vor.u32 %v1195, %v1198
        %v1200 = vrot.slane %v1199, 4
        %v1202 = vshll.u32 %v217, 16
        %v1204 = vrot.slane %v1202, 5
        %v1205 = vsel %vm1065, %v1200, %v1204
        %v1207 = vshrl.u32 %v218, 16
        %v1209 = vrot.slane %v1207, 4
        %v1210 = vshll.u32 %v218, 16
        %v1212 = vrot.slane %v1210, 5
        %v1213 = vor.u32 %v1209, %v1212
        %v1214 = vrot.slane %v1213, 4
        %v1216 = vshll.u32 %v219, 16
        %v1218 = vrot.slane %v1216, 5
        %v1219 = vsel %vm1065, %v1214, %v1218
        %v1221 = vshrl.u32 %v220, 16
        %v1223 = vrot.slane %v1221, 4
        %v1224 = vshll.u32 %v220, 16
        %v1226 = vrot.slane %v1224, 5
        %v1227 = vor.u32 %v1223, %v1226
        %v1228 = vrot.slane %v1227, 4
        %v1230 = vshll.u32 %v221, 16
        %v1232 = vrot.slane %v1230, 5
        %v1233 = vsel %vm1065, %v1228, %v1232
        %v1235 = vshrl.u32 %v222, 16
        %v1237 = vrot.slane %v1235, 4
        %v1238 = vshll.u32 %v222, 16
        %v1240 = vrot.slane %v1238, 5
        %v1241 = vor.u32 %v1237, %v1240
        %v1242 = vrot.slane %v1241, 4
        %v1244 = vshll.u32 %v223, 16
        %v1246 = vrot.slane %v1244, 5
        %v1247 = vsel %vm1065, %v1242, %v1246
        %v1249 = vshrl.u32 %v224, 16
        %v1251 = vrot.slane %v1249, 4
        %v1252 = vshll.u32 %v224, 16
        %v1254 = vrot.slane %v1252, 5
        %v1255 = vor.u32 %v1251, %v1254
        %v1256 = vrot.slane %v1255, 4
        %v1258 = vshll.u32 %v225, 16
        %v1260 = vrot.slane %v1258, 5
        %v1261 = vsel %vm1065, %v1256, %v1260
        %v1263 = vshrl.u32 %v226, 16
        %v1265 = vrot.slane %v1263, 4
        %v1266 = vshll.u32 %v226, 16
        %v1268 = vrot.slane %v1266, 5
        %v1269 = vor.u32 %v1265, %v1268
        %v1270 = vrot.slane %v1269, 4
        %v1272 = vshll.u32 %v227, 16
        %v1274 = vrot.slane %v1272, 5
        %v1275 = vsel %vm1065, %v1270, %v1274
        %v1277 = vshrl.u32 %v228, 16
        %v1279 = vrot.slane %v1277, 4
        %v1280 = vshll.u32 %v228, 16
        %v1282 = vrot.slane %v1280, 5
        %v1283 = vor.u32 %v1279, %v1282
        %v1284 = vrot.slane %v1283, 4
        %v1286 = vshll.u32 %v229, 16
        %v1288 = vrot.slane %v1286, 5
        %v1289 = vsel %vm1065, %v1284, %v1288
        %v1306 = vcombine.low %v1079, %v1135
        %v1308 = vunpack.c.l.s4 1983009808
        %v1309 = vunpack.c.0.s8 %v1308
        %v1310 = vlaneseq
        %v1311 = vshrl.u32 %v1310, 7
        %v1312 = vsub.s32 %v1309, %v1311
        %v1313 = vrot.slane %v1306, %v1312
        %v1314 = vcombine.low %v1107, %v1163
        %v1316 = vunpack.c.l.s4 1983009808
        %v1317 = vunpack.c.0.s8 %v1316
        %v1318 = vlaneseq
        %v1319 = vshrl.u32 %v1318, 7
        %v1320 = vsub.s32 %v1317, %v1319
        %v1321 = vrot.slane %v1314, %v1320
        %v1322 = vcombine.low %v1313, %v1321
        %v1323 = vcombine.high %v1313, %v1321
        %v1325 = vunpack.c.l.s4 1934713408
        %v1326 = vunpack.c.0.s8 %v1325
        %v1327 = vlaneseq
        %v1328 = vshrl.u32 %v1327, 7
        %v1329 = vsub.s32 %v1326, %v1328
        %v1330 = vrot.slane %v1322, %v1329
        %v1332 = vunpack.c.l.s4 1934713408
        %v1333 = vunpack.c.0.s8 %v1332
        %v1334 = vlaneseq
        %v1335 = vshrl.u32 %v1334, 7
        %v1336 = vsub.s32 %v1333, %v1335
        %v1337 = vrot.slane %v1323, %v1336
        %v1338 = vcombine.high %v1330, 0
        %v1339 = vcombine.high %v1337, 0
        %v1340 = vcombine.low %v1093, %v1149
        %v1342 = vunpack.c.l.s4 1983009808
        %v1343 = vunpack.c.0.s8 %v1342
        %v1344 = vlaneseq
        %v1345 = vshrl.u32 %v1344, 7
        %v1346 = vsub.s32 %v1343, %v1345
        %v1347 = vrot.slane %v1340, %v1346
        %v1348 = vcombine.low %v1121, %v1177
        %v1350 = vunpack.c.l.s4 1983009808
        %v1351 = vunpack.c.0.s8 %v1350
        %v1352 = vlaneseq
        %v1353 = vshrl.u32 %v1352, 7
        %v1354 = vsub.s32 %v1351, %v1353
        %v1355 = vrot.slane %v1348, %v1354
        %v1356 = vcombine.low %v1347, %v1355
        %v1357 = vcombine.high %v1347, %v1355
        %v1359 = vunpack.c.l.s4 1934713408
        %v1360 = vunpack.c.0.s8 %v1359
        %v1361 = vlaneseq
        %v1362 = vshrl.u32 %v1361, 7
        %v1363 = vsub.s32 %v1360, %v1362
        %v1364 = vrot.slane %v1356, %v1363
        %v1366 = vunpack.c.l.s4 1934713408
        %v1367 = vunpack.c.0.s8 %v1366
        %v1368 = vlaneseq
        %v1369 = vshrl.u32 %v1368, 7
        %v1370 = vsub.s32 %v1367, %v1369
        %v1371 = vrot.slane %v1357, %v1370
        %v1372 = vcombine.high %v1364, 0
        %v1373 = vcombine.high %v1371, 0
        %v1374 = vcombine.low %v1191, %v1247
        %v1376 = vunpack.c.l.s4 1983009808
        %v1377 = vunpack.c.0.s8 %v1376
        %v1378 = vlaneseq
        %v1379 = vshrl.u32 %v1378, 7
        %v1380 = vsub.s32 %v1377, %v1379
        %v1381 = vrot.slane %v1374, %v1380
        %v1382 = vcombine.low %v1219, %v1275
        %v1384 = vunpack.c.l.s4 1983009808
        %v1385 = vunpack.c.0.s8 %v1384
        %v1386 = vlaneseq
        %v1387 = vshrl.u32 %v1386, 7
        %v1388 = vsub.s32 %v1385, %v1387
        %v1389 = vrot.slane %v1382, %v1388
        %v1390 = vcombine.low %v1381, %v1389
        %v1391 = vcombine.high %v1381, %v1389
        %v1393 = vunpack.c.l.s4 1934713408
        %v1394 = vunpack.c.0.s8 %v1393
        %v1395 = vlaneseq
        %v1396 = vshrl.u32 %v1395, 7
        %v1397 = vsub.s32 %v1394, %v1396
        %v1398 = vrot.slane %v1390, %v1397
        %v1400 = vunpack.c.l.s4 1934713408
        %v1401 = vunpack.c.0.s8 %v1400
        %v1402 = vlaneseq
        %v1403 = vshrl.u32 %v1402, 7
        %v1404 = vsub.s32 %v1401, %v1403
        %v1405 = vrot.slane %v1391, %v1404
        %v1406 = vcombine.high %v1398, 0
        %v1407 = vcombine.high %v1405, 0
        %v1408 = vcombine.low %v1205, %v1261
        %v1410 = vunpack.c.l.s4 1983009808
        %v1411 = vunpack.c.0.s8 %v1410
        %v1412 = vlaneseq
        %v1413 = vshrl.u32 %v1412, 7
        %v1414 = vsub.s32 %v1411, %v1413
        %v1415 = vrot.slane %v1408, %v1414
        %v1416 = vcombine.low %v1233, %v1289
        %v1418 = vunpack.c.l.s4 1983009808
        %v1419 = vunpack.c.0.s8 %v1418
        %v1420 = vlaneseq
        %v1421 = vshrl.u32 %v1420, 7
        %v1422 = vsub.s32 %v1419, %v1421
        %v1423 = vrot.slane %v1416, %v1422
        %v1424 = vcombine.low %v1415, %v1423
        %v1425 = vcombine.high %v1415, %v1423
        %v1427 = vunpack.c.l.s4 1934713408
        %v1428 = vunpack.c.0.s8 %v1427
        %v1429 = vlaneseq
        %v1430 = vshrl.u32 %v1429, 7
        %v1431 = vsub.s32 %v1428, %v1430
        %v1432 = vrot.slane %v1424, %v1431
        %v1434 = vunpack.c.l.s4 1934713408
        %v1435 = vunpack.c.0.s8 %v1434
        %v1436 = vlaneseq
        %v1437 = vshrl.u32 %v1436, 7
        %v1438 = vsub.s32 %v1435, %v1437
        %v1439 = vrot.slane %v1425, %v1438
        %v1440 = vcombine.high %v1432, 0
        %v1441 = vcombine.high %v1439, 0
        %v1444 = vpack.i.b16 %v1364, %v1330
        %v1445 = vshrl.u32 %v1330, 16
        %v1446 = vshrl.u32 %v1364, 16
        %v1447 = vpack.i.b16 %v1446, %v1445
        %v1450 = vpack.i.b16 %v1372, %v1338
        %v1451 = vshrl.u32 %v1338, 16
        %v1452 = vshrl.u32 %v1372, 16
        %v1453 = vpack.i.b16 %v1452, %v1451
        %v1456 = vpack.i.b16 %v1371, %v1337
        %v1457 = vshrl.u32 %v1337, 16
        %v1458 = vshrl.u32 %v1371, 16
        %v1459 = vpack.i.b16 %v1458, %v1457
        %v1462 = vpack.i.b16 %v1373, %v1339
        %v1463 = vshrl.u32 %v1339, 16
        %v1464 = vshrl.u32 %v1373, 16
        %v1465 = vpack.i.b16 %v1464, %v1463
        %v1468 = vpack.i.b16 %v1432, %v1398
        %v1469 = vshrl.u32 %v1398, 16
        %v1470 = vshrl.u32 %v1432, 16
        %v1471 = vpack.i.b16 %v1470, %v1469
        %v1474 = vpack.i.b16 %v1440, %v1406
        %v1475 = vshrl.u32 %v1406, 16
        %v1476 = vshrl.u32 %v1440, 16
        %v1477 = vpack.i.b16 %v1476, %v1475
        %v1480 = vpack.i.b16 %v1439, %v1405
        %v1481 = vshrl.u32 %v1405, 16
        %v1482 = vshrl.u32 %v1439, 16
        %v1483 = vpack.i.b16 %v1482, %v1481
        %v1486 = vpack.i.b16 %v1441, %v1407
        %v1487 = vshrl.u32 %v1407, 16
        %v1488 = vshrl.u32 %v1441, 16
        %v1489 = vpack.i.b16 %v1488, %v1487
        %v1490 = vunpack.c.l.b16 %v1444
        %v1491 = vunpack.c.l.b16 %v1468
        %v1492 = vpack.c.b16 %v1491, %v1490
        %v1493 = vunpack.c.l.b16 %v1447
        %v1494 = vunpack.c.l.b16 %v1471
        %v1495 = vpack.c.b16 %v1494, %v1493
        %1496 = vrot.lane.b32.xlu0 %v1495, 8
        %v1497 = vpop.permute.xlu0 %1496
        %v1498 = vunpack.c.l.b16 %v1450
        %v1499 = vunpack.c.l.b16 %v1474
        %v1500 = vpack.c.b16 %v1499, %v1498
        %1501 = vrot.lane.b32.xlu0 %v1500, 16
        %v1502 = vpop.permute.xlu0 %1501
        %v1503 = vunpack.c.l.b16 %v1453
        %v1504 = vunpack.c.l.b16 %v1477
        %v1505 = vpack.c.b16 %v1504, %v1503
        %1506 = vrot.lane.b32.xlu0 %v1505, 24
        %v1507 = vpop.permute.xlu0 %1506
        %v1508 = vunpack.c.l.b16 %v1456
        %v1509 = vunpack.c.l.b16 %v1480
        %v1510 = vpack.c.b16 %v1509, %v1508
        %1511 = vrot.lane.b32.xlu0 %v1510, 32
        %v1512 = vpop.permute.xlu0 %1511
        %v1513 = vunpack.c.l.b16 %v1459
        %v1514 = vunpack.c.l.b16 %v1483
        %v1515 = vpack.c.b16 %v1514, %v1513
        %1516 = vrot.lane.b32.xlu0 %v1515, 40
        %v1517 = vpop.permute.xlu0 %1516
        %v1518 = vunpack.c.l.b16 %v1462
        %v1519 = vunpack.c.l.b16 %v1486
        %v1520 = vpack.c.b16 %v1519, %v1518
        %1521 = vrot.lane.b32.xlu0 %v1520, 48
        %v1522 = vpop.permute.xlu0 %1521
        %v1523 = vunpack.c.l.b16 %v1465
        %v1524 = vunpack.c.l.b16 %v1489
        %v1525 = vpack.c.b16 %v1524, %v1523
        %1526 = vrot.lane.b32.xlu0 %v1525, 56
        %v1527 = vpop.permute.xlu0 %1526
        %v1530 = vsel %vm452, %v1492, %v1497
        %v1532 = vsel %vm456, %v1530, %v1502
        %v1534 = vsel %vm459, %v1532, %v1507
        %v1536 = vsel %vm462, %v1534, %v1512
        %v1538 = vsel %vm465, %v1536, %v1517
        %v1540 = vsel %vm468, %v1538, %v1522
        %v1542 = vsel %vm471, %v1540, %v1527
        %1544 = vrot.lane.b32.xlu0 %v1079, 127
        %v1545 = vpop.permute.xlu0 %1544
        %1546 = vrot.lane.b32.xlu0 %v1093, 127
        %v1547 = vpop.permute.xlu0 %1546
        %1548 = vrot.lane.b32.xlu0 %v1107, 127
        %v1549 = vpop.permute.xlu0 %1548
        %1550 = vrot.lane.b32.xlu0 %v1121, 127
        %v1551 = vpop.permute.xlu0 %1550
        %1552 = vrot.lane.b32.xlu0 %v1135, 127
        %v1553 = vpop.permute.xlu0 %1552
        %1554 = vrot.lane.b32.xlu0 %v1149, 127
        %v1555 = vpop.permute.xlu0 %1554
        %1556 = vrot.lane.b32.xlu0 %v1163, 127
        %v1557 = vpop.permute.xlu0 %1556
        %1558 = vrot.lane.b32.xlu0 %v1177, 127
        %v1559 = vpop.permute.xlu0 %1558
        %1560 = vrot.lane.b32.xlu0 %v1191, 127
        %v1561 = vpop.permute.xlu0 %1560
        %1562 = vrot.lane.b32.xlu0 %v1205, 127
        %v1563 = vpop.permute.xlu0 %1562
        %1564 = vrot.lane.b32.xlu0 %v1219, 127
        %v1565 = vpop.permute.xlu0 %1564
        %1566 = vrot.lane.b32.xlu0 %v1233, 127
        %v1567 = vpop.permute.xlu0 %1566
        %1568 = vrot.lane.b32.xlu0 %v1247, 127
        %v1569 = vpop.permute.xlu0 %1568
        %1570 = vrot.lane.b32.xlu0 %v1261, 127
        %v1571 = vpop.permute.xlu0 %1570
        %1572 = vrot.lane.b32.xlu0 %v1275, 127
        %v1573 = vpop.permute.xlu0 %1572
        %1574 = vrot.lane.b32.xlu0 %v1289, 127
        %v1575 = vpop.permute.xlu0 %1574
        %v1592 = vcombine.low %v1545, %v1553
        %v1594 = vunpack.c.l.s4 1983009808
        %v1595 = vunpack.c.0.s8 %v1594
        %v1596 = vlaneseq
        %v1597 = vshrl.u32 %v1596, 7
        %v1598 = vsub.s32 %v1595, %v1597
        %v1599 = vrot.slane %v1592, %v1598
        %v1600 = vcombine.low %v1549, %v1557
        %v1602 = vunpack.c.l.s4 1983009808
        %v1603 = vunpack.c.0.s8 %v1602
        %v1604 = vlaneseq
        %v1605 = vshrl.u32 %v1604, 7
        %v1606 = vsub.s32 %v1603, %v1605
        %v1607 = vrot.slane %v1600, %v1606
        %v1608 = vcombine.low %v1599, %v1607
        %v1609 = vcombine.high %v1599, %v1607
        %v1611 = vunpack.c.l.s4 1934713408
        %v1612 = vunpack.c.0.s8 %v1611
        %v1613 = vlaneseq
        %v1614 = vshrl.u32 %v1613, 7
        %v1615 = vsub.s32 %v1612, %v1614
        %v1616 = vrot.slane %v1608, %v1615
        %v1618 = vunpack.c.l.s4 1934713408
        %v1619 = vunpack.c.0.s8 %v1618
        %v1620 = vlaneseq
        %v1621 = vshrl.u32 %v1620, 7
        %v1622 = vsub.s32 %v1619, %v1621
        %v1623 = vrot.slane %v1609, %v1622
        %v1624 = vcombine.high %v1616, 0
        %v1625 = vcombine.high %v1623, 0
        %v1626 = vcombine.low %v1547, %v1555
        %v1628 = vunpack.c.l.s4 1983009808
        %v1629 = vunpack.c.0.s8 %v1628
        %v1630 = vlaneseq
        %v1631 = vshrl.u32 %v1630, 7
        %v1632 = vsub.s32 %v1629, %v1631
        %v1633 = vrot.slane %v1626, %v1632
        %v1634 = vcombine.low %v1551, %v1559
        %v1636 = vunpack.c.l.s4 1983009808
        %v1637 = vunpack.c.0.s8 %v1636
        %v1638 = vlaneseq
        %v1639 = vshrl.u32 %v1638, 7
        %v1640 = vsub.s32 %v1637, %v1639
        %v1641 = vrot.slane %v1634, %v1640
        %v1642 = vcombine.low %v1633, %v1641
        %v1643 = vcombine.high %v1633, %v1641
        %v1645 = vunpack.c.l.s4 1934713408
        %v1646 = vunpack.c.0.s8 %v1645
        %v1647 = vlaneseq
        %v1648 = vshrl.u32 %v1647, 7
        %v1649 = vsub.s32 %v1646, %v1648
        %v1650 = vrot.slane %v1642, %v1649
        %v1652 = vunpack.c.l.s4 1934713408
        %v1653 = vunpack.c.0.s8 %v1652
        %v1654 = vlaneseq
        %v1655 = vshrl.u32 %v1654, 7
        %v1656 = vsub.s32 %v1653, %v1655
        %v1657 = vrot.slane %v1643, %v1656
        %v1658 = vcombine.high %v1650, 0
        %v1659 = vcombine.high %v1657, 0
        %v1660 = vcombine.low %v1561, %v1569
        %v1662 = vunpack.c.l.s4 1983009808
        %v1663 = vunpack.c.0.s8 %v1662
        %v1664 = vlaneseq
        %v1665 = vshrl.u32 %v1664, 7
        %v1666 = vsub.s32 %v1663, %v1665
        %v1667 = vrot.slane %v1660, %v1666
        %v1668 = vcombine.low %v1565, %v1573
        %v1670 = vunpack.c.l.s4 1983009808
        %v1671 = vunpack.c.0.s8 %v1670
        %v1672 = vlaneseq
        %v1673 = vshrl.u32 %v1672, 7
        %v1674 = vsub.s32 %v1671, %v1673
        %v1675 = vrot.slane %v1668, %v1674
        %v1676 = vcombine.low %v1667, %v1675
        %v1677 = vcombine.high %v1667, %v1675
        %v1679 = vunpack.c.l.s4 1934713408
        %v1680 = vunpack.c.0.s8 %v1679
        %v1681 = vlaneseq
        %v1682 = vshrl.u32 %v1681, 7
        %v1683 = vsub.s32 %v1680, %v1682
        %v1684 = vrot.slane %v1676, %v1683
        %v1686 = vunpack.c.l.s4 1934713408
        %v1687 = vunpack.c.0.s8 %v1686
        %v1688 = vlaneseq
        %v1689 = vshrl.u32 %v1688, 7
        %v1690 = vsub.s32 %v1687, %v1689
        %v1691 = vrot.slane %v1677, %v1690
        %v1692 = vcombine.high %v1684, 0
        %v1693 = vcombine.high %v1691, 0
        %v1694 = vcombine.low %v1563, %v1571
        %v1696 = vunpack.c.l.s4 1983009808
        %v1697 = vunpack.c.0.s8 %v1696
        %v1698 = vlaneseq
        %v1699 = vshrl.u32 %v1698, 7
        %v1700 = vsub.s32 %v1697, %v1699
        %v1701 = vrot.slane %v1694, %v1700
        %v1702 = vcombine.low %v1567, %v1575
        %v1704 = vunpack.c.l.s4 1983009808
        %v1705 = vunpack.c.0.s8 %v1704
        %v1706 = vlaneseq
        %v1707 = vshrl.u32 %v1706, 7
        %v1708 = vsub.s32 %v1705, %v1707
        %v1709 = vrot.slane %v1702, %v1708
        %v1710 = vcombine.low %v1701, %v1709
        %v1711 = vcombine.high %v1701, %v1709
        %v1713 = vunpack.c.l.s4 1934713408
        %v1714 = vunpack.c.0.s8 %v1713
        %v1715 = vlaneseq
        %v1716 = vshrl.u32 %v1715, 7
        %v1717 = vsub.s32 %v1714, %v1716
        %v1718 = vrot.slane %v1710, %v1717
        %v1720 = vunpack.c.l.s4 1934713408
        %v1721 = vunpack.c.0.s8 %v1720
        %v1722 = vlaneseq
        %v1723 = vshrl.u32 %v1722, 7
        %v1724 = vsub.s32 %v1721, %v1723
        %v1725 = vrot.slane %v1711, %v1724
        %v1726 = vcombine.high %v1718, 0
        %v1727 = vcombine.high %v1725, 0
        %v1730 = vpack.i.b16 %v1650, %v1616
        %v1731 = vshrl.u32 %v1616, 16
        %v1732 = vshrl.u32 %v1650, 16
        %v1733 = vpack.i.b16 %v1732, %v1731
        %v1736 = vpack.i.b16 %v1658, %v1624
        %v1737 = vshrl.u32 %v1624, 16
        %v1738 = vshrl.u32 %v1658, 16
        %v1739 = vpack.i.b16 %v1738, %v1737
        %v1742 = vpack.i.b16 %v1657, %v1623
        %v1743 = vshrl.u32 %v1623, 16
        %v1744 = vshrl.u32 %v1657, 16
        %v1745 = vpack.i.b16 %v1744, %v1743
        %v1748 = vpack.i.b16 %v1659, %v1625
        %v1749 = vshrl.u32 %v1625, 16
        %v1750 = vshrl.u32 %v1659, 16
        %v1751 = vpack.i.b16 %v1750, %v1749
        %v1754 = vpack.i.b16 %v1718, %v1684
        %v1755 = vshrl.u32 %v1684, 16
        %v1756 = vshrl.u32 %v1718, 16
        %v1757 = vpack.i.b16 %v1756, %v1755
        %v1760 = vpack.i.b16 %v1726, %v1692
        %v1761 = vshrl.u32 %v1692, 16
        %v1762 = vshrl.u32 %v1726, 16
        %v1763 = vpack.i.b16 %v1762, %v1761
        %v1766 = vpack.i.b16 %v1725, %v1691
        %v1767 = vshrl.u32 %v1691, 16
        %v1768 = vshrl.u32 %v1725, 16
        %v1769 = vpack.i.b16 %v1768, %v1767
        %v1772 = vpack.i.b16 %v1727, %v1693
        %v1773 = vshrl.u32 %v1693, 16
        %v1774 = vshrl.u32 %v1727, 16
        %v1775 = vpack.i.b16 %v1774, %v1773
        %v1776 = vunpack.c.l.b16 %v1730
        %v1777 = vunpack.c.l.b16 %v1754
        %v1778 = vpack.c.b16 %v1777, %v1776
        %v1779 = vunpack.c.l.b16 %v1733
        %v1780 = vunpack.c.l.b16 %v1757
        %v1781 = vpack.c.b16 %v1780, %v1779
        %1782 = vrot.lane.b32.xlu0 %v1781, 8
        %v1783 = vpop.permute.xlu0 %1782
        %v1784 = vunpack.c.l.b16 %v1736
        %v1785 = vunpack.c.l.b16 %v1760
        %v1786 = vpack.c.b16 %v1785, %v1784
        %1787 = vrot.lane.b32.xlu0 %v1786, 16
        %v1788 = vpop.permute.xlu0 %1787
        %v1789 = vunpack.c.l.b16 %v1739
        %v1790 = vunpack.c.l.b16 %v1763
        %v1791 = vpack.c.b16 %v1790, %v1789
        %1792 = vrot.lane.b32.xlu0 %v1791, 24
        %v1793 = vpop.permute.xlu0 %1792
        %v1794 = vunpack.c.l.b16 %v1742
        %v1795 = vunpack.c.l.b16 %v1766
        %v1796 = vpack.c.b16 %v1795, %v1794
        %1797 = vrot.lane.b32.xlu0 %v1796, 32
        %v1798 = vpop.permute.xlu0 %1797
        %v1799 = vunpack.c.l.b16 %v1745
        %v1800 = vunpack.c.l.b16 %v1769
        %v1801 = vpack.c.b16 %v1800, %v1799
        %1802 = vrot.lane.b32.xlu0 %v1801, 40
        %v1803 = vpop.permute.xlu0 %1802
        %v1804 = vunpack.c.l.b16 %v1748
        %v1805 = vunpack.c.l.b16 %v1772
        %v1806 = vpack.c.b16 %v1805, %v1804
        %1807 = vrot.lane.b32.xlu0 %v1806, 48
        %v1808 = vpop.permute.xlu0 %1807
        %v1809 = vunpack.c.l.b16 %v1751
        %v1810 = vunpack.c.l.b16 %v1775
        %v1811 = vpack.c.b16 %v1810, %v1809
        %1812 = vrot.lane.b32.xlu0 %v1811, 56
        %v1813 = vpop.permute.xlu0 %1812
        %v1816 = vsel %vm452, %v1778, %v1783
        %v1818 = vsel %vm456, %v1816, %v1788
        %v1820 = vsel %vm459, %v1818, %v1793
        %v1822 = vsel %vm462, %v1820, %v1798
        %v1824 = vsel %vm465, %v1822, %v1803
        %v1826 = vsel %vm468, %v1824, %v1808
        %v1828 = vsel %vm471, %v1826, %v1813
        %1830 = vrot.lane.b32.xlu0 %v1079, 126
        %v1831 = vpop.permute.xlu0 %1830
        %1832 = vrot.lane.b32.xlu0 %v1093, 126
        %v1833 = vpop.permute.xlu0 %1832
        %1834 = vrot.lane.b32.xlu0 %v1107, 126
        %v1835 = vpop.permute.xlu0 %1834
        %1836 = vrot.lane.b32.xlu0 %v1121, 126
        %v1837 = vpop.permute.xlu0 %1836
        %1838 = vrot.lane.b32.xlu0 %v1135, 126
        %v1839 = vpop.permute.xlu0 %1838
        %1840 = vrot.lane.b32.xlu0 %v1149, 126
        %v1841 = vpop.permute.xlu0 %1840
        %1842 = vrot.lane.b32.xlu0 %v1163, 126
        %v1843 = vpop.permute.xlu0 %1842
        %1844 = vrot.lane.b32.xlu0 %v1177, 126
        %v1845 = vpop.permute.xlu0 %1844
        %1846 = vrot.lane.b32.xlu0 %v1191, 126
        %v1847 = vpop.permute.xlu0 %1846
        %1848 = vrot.lane.b32.xlu0 %v1205, 126
        %v1849 = vpop.permute.xlu0 %1848
        %1850 = vrot.lane.b32.xlu0 %v1219, 126
        %v1851 = vpop.permute.xlu0 %1850
        %1852 = vrot.lane.b32.xlu0 %v1233, 126
        %v1853 = vpop.permute.xlu0 %1852
        %1854 = vrot.lane.b32.xlu0 %v1247, 126
        %v1855 = vpop.permute.xlu0 %1854
        %1856 = vrot.lane.b32.xlu0 %v1261, 126
        %v1857 = vpop.permute.xlu0 %1856
        %1858 = vrot.lane.b32.xlu0 %v1275, 126
        %v1859 = vpop.permute.xlu0 %1858
        %1860 = vrot.lane.b32.xlu0 %v1289, 126
        %v1861 = vpop.permute.xlu0 %1860
        %v1878 = vcombine.low %v1831, %v1839
        %v1880 = vunpack.c.l.s4 1983009808
        %v1881 = vunpack.c.0.s8 %v1880
        %v1882 = vlaneseq
        %v1883 = vshrl.u32 %v1882, 7
        %v1884 = vsub.s32 %v1881, %v1883
        %v1885 = vrot.slane %v1878, %v1884
        %v1886 = vcombine.low %v1835, %v1843
        %v1888 = vunpack.c.l.s4 1983009808
        %v1889 = vunpack.c.0.s8 %v1888
        %v1890 = vlaneseq
        %v1891 = vshrl.u32 %v1890, 7
        %v1892 = vsub.s32 %v1889, %v1891
        %v1893 = vrot.slane %v1886, %v1892
        %v1894 = vcombine.low %v1885, %v1893
        %v1895 = vcombine.high %v1885, %v1893
        %v1897 = vunpack.c.l.s4 1934713408
        %v1898 = vunpack.c.0.s8 %v1897
        %v1899 = vlaneseq
        %v1900 = vshrl.u32 %v1899, 7
        %v1901 = vsub.s32 %v1898, %v1900
        %v1902 = vrot.slane %v1894, %v1901
        %v1904 = vunpack.c.l.s4 1934713408
        %v1905 = vunpack.c.0.s8 %v1904
        %v1906 = vlaneseq
        %v1907 = vshrl.u32 %v1906, 7
        %v1908 = vsub.s32 %v1905, %v1907
        %v1909 = vrot.slane %v1895, %v1908
        %v1910 = vcombine.high %v1902, 0
        %v1911 = vcombine.high %v1909, 0
        %v1912 = vcombine.low %v1833, %v1841
        %v1914 = vunpack.c.l.s4 1983009808
        %v1915 = vunpack.c.0.s8 %v1914
        %v1916 = vlaneseq
        %v1917 = vshrl.u32 %v1916, 7
        %v1918 = vsub.s32 %v1915, %v1917
        %v1919 = vrot.slane %v1912, %v1918
        %v1920 = vcombine.low %v1837, %v1845
        %v1922 = vunpack.c.l.s4 1983009808
        %v1923 = vunpack.c.0.s8 %v1922
        %v1924 = vlaneseq
        %v1925 = vshrl.u32 %v1924, 7
        %v1926 = vsub.s32 %v1923, %v1925
        %v1927 = vrot.slane %v1920, %v1926
        %v1928 = vcombine.low %v1919, %v1927
        %v1929 = vcombine.high %v1919, %v1927
        %v1931 = vunpack.c.l.s4 1934713408
        %v1932 = vunpack.c.0.s8 %v1931
        %v1933 = vlaneseq
        %v1934 = vshrl.u32 %v1933, 7
        %v1935 = vsub.s32 %v1932, %v1934
        %v1936 = vrot.slane %v1928, %v1935
        %v1938 = vunpack.c.l.s4 1934713408
        %v1939 = vunpack.c.0.s8 %v1938
        %v1940 = vlaneseq
        %v1941 = vshrl.u32 %v1940, 7
        %v1942 = vsub.s32 %v1939, %v1941
        %v1943 = vrot.slane %v1929, %v1942
        %v1944 = vcombine.high %v1936, 0
        %v1945 = vcombine.high %v1943, 0
        %v1946 = vcombine.low %v1847, %v1855
        %v1948 = vunpack.c.l.s4 1983009808
        %v1949 = vunpack.c.0.s8 %v1948
        %v1950 = vlaneseq
        %v1951 = vshrl.u32 %v1950, 7
        %v1952 = vsub.s32 %v1949, %v1951
        %v1953 = vrot.slane %v1946, %v1952
        %v1954 = vcombine.low %v1851, %v1859
        %v1956 = vunpack.c.l.s4 1983009808
        %v1957 = vunpack.c.0.s8 %v1956
        %v1958 = vlaneseq
        %v1959 = vshrl.u32 %v1958, 7
        %v1960 = vsub.s32 %v1957, %v1959
        %v1961 = vrot.slane %v1954, %v1960
        %v1962 = vcombine.low %v1953, %v1961
        %v1963 = vcombine.high %v1953, %v1961
        %v1965 = vunpack.c.l.s4 1934713408
        %v1966 = vunpack.c.0.s8 %v1965
        %v1967 = vlaneseq
        %v1968 = vshrl.u32 %v1967, 7
        %v1969 = vsub.s32 %v1966, %v1968
        %v1970 = vrot.slane %v1962, %v1969
        %v1972 = vunpack.c.l.s4 1934713408
        %v1973 = vunpack.c.0.s8 %v1972
        %v1974 = vlaneseq
        %v1975 = vshrl.u32 %v1974, 7
        %v1976 = vsub.s32 %v1973, %v1975
        %v1977 = vrot.slane %v1963, %v1976
        %v1978 = vcombine.high %v1970, 0
        %v1979 = vcombine.high %v1977, 0
        %v1980 = vcombine.low %v1849, %v1857
        %v1982 = vunpack.c.l.s4 1983009808
        %v1983 = vunpack.c.0.s8 %v1982
        %v1984 = vlaneseq
        %v1985 = vshrl.u32 %v1984, 7
        %v1986 = vsub.s32 %v1983, %v1985
        %v1987 = vrot.slane %v1980, %v1986
        %v1988 = vcombine.low %v1853, %v1861
        %v1990 = vunpack.c.l.s4 1983009808
        %v1991 = vunpack.c.0.s8 %v1990
        %v1992 = vlaneseq
        %v1993 = vshrl.u32 %v1992, 7
        %v1994 = vsub.s32 %v1991, %v1993
        %v1995 = vrot.slane %v1988, %v1994
        %v1996 = vcombine.low %v1987, %v1995
        %v1997 = vcombine.high %v1987, %v1995
        %v1999 = vunpack.c.l.s4 1934713408
        %v2000 = vunpack.c.0.s8 %v1999
        %v2001 = vlaneseq
        %v2002 = vshrl.u32 %v2001, 7
        %v2003 = vsub.s32 %v2000, %v2002
        %v2004 = vrot.slane %v1996, %v2003
        %v2006 = vunpack.c.l.s4 1934713408
        %v2007 = vunpack.c.0.s8 %v2006
        %v2008 = vlaneseq
        %v2009 = vshrl.u32 %v2008, 7
        %v2010 = vsub.s32 %v2007, %v2009
        %v2011 = vrot.slane %v1997, %v2010
        %v2012 = vcombine.high %v2004, 0
        %v2013 = vcombine.high %v2011, 0
        %v2016 = vpack.i.b16 %v1936, %v1902
        %v2017 = vshrl.u32 %v1902, 16
        %v2018 = vshrl.u32 %v1936, 16
        %v2019 = vpack.i.b16 %v2018, %v2017
        %v2022 = vpack.i.b16 %v1944, %v1910
        %v2023 = vshrl.u32 %v1910, 16
        %v2024 = vshrl.u32 %v1944, 16
        %v2025 = vpack.i.b16 %v2024, %v2023
        %v2028 = vpack.i.b16 %v1943, %v1909
        %v2029 = vshrl.u32 %v1909, 16
        %v2030 = vshrl.u32 %v1943, 16
        %v2031 = vpack.i.b16 %v2030, %v2029
        %v2034 = vpack.i.b16 %v1945, %v1911
        %v2035 = vshrl.u32 %v1911, 16
        %v2036 = vshrl.u32 %v1945, 16
        %v2037 = vpack.i.b16 %v2036, %v2035
        %v2040 = vpack.i.b16 %v2004, %v1970
        %v2041 = vshrl.u32 %v1970, 16
        %v2042 = vshrl.u32 %v2004, 16
        %v2043 = vpack.i.b16 %v2042, %v2041
        %v2046 = vpack.i.b16 %v2012, %v1978
        %v2047 = vshrl.u32 %v1978, 16
        %v2048 = vshrl.u32 %v2012, 16
        %v2049 = vpack.i.b16 %v2048, %v2047
        %v2052 = vpack.i.b16 %v2011, %v1977
        %v2053 = vshrl.u32 %v1977, 16
        %v2054 = vshrl.u32 %v2011, 16
        %v2055 = vpack.i.b16 %v2054, %v2053
        %v2058 = vpack.i.b16 %v2013, %v1979
        %v2059 = vshrl.u32 %v1979, 16
        %v2060 = vshrl.u32 %v2013, 16
        %v2061 = vpack.i.b16 %v2060, %v2059
        %v2062 = vunpack.c.l.b16 %v2016
        %v2063 = vunpack.c.l.b16 %v2040
        %v2064 = vpack.c.b16 %v2063, %v2062
        %v2065 = vunpack.c.l.b16 %v2019
        %v2066 = vunpack.c.l.b16 %v2043
        %v2067 = vpack.c.b16 %v2066, %v2065
        %2068 = vrot.lane.b32.xlu0 %v2067, 8
        %v2069 = vpop.permute.xlu0 %2068
        %v2070 = vunpack.c.l.b16 %v2022
        %v2071 = vunpack.c.l.b16 %v2046
        %v2072 = vpack.c.b16 %v2071, %v2070
        %2073 = vrot.lane.b32.xlu0 %v2072, 16
        %v2074 = vpop.permute.xlu0 %2073
        %v2075 = vunpack.c.l.b16 %v2025
        %v2076 = vunpack.c.l.b16 %v2049
        %v2077 = vpack.c.b16 %v2076, %v2075
        %2078 = vrot.lane.b32.xlu0 %v2077, 24
        %v2079 = vpop.permute.xlu0 %2078
        %v2080 = vunpack.c.l.b16 %v2028
        %v2081 = vunpack.c.l.b16 %v2052
        %v2082 = vpack.c.b16 %v2081, %v2080
        %2083 = vrot.lane.b32.xlu0 %v2082, 32
        %v2084 = vpop.permute.xlu0 %2083
        %v2085 = vunpack.c.l.b16 %v2031
        %v2086 = vunpack.c.l.b16 %v2055
        %v2087 = vpack.c.b16 %v2086, %v2085
        %2088 = vrot.lane.b32.xlu0 %v2087, 40
        %v2089 = vpop.permute.xlu0 %2088
        %v2090 = vunpack.c.l.b16 %v2034
        %v2091 = vunpack.c.l.b16 %v2058
        %v2092 = vpack.c.b16 %v2091, %v2090
        %2093 = vrot.lane.b32.xlu0 %v2092, 48
        %v2094 = vpop.permute.xlu0 %2093
        %v2095 = vunpack.c.l.b16 %v2037
        %v2096 = vunpack.c.l.b16 %v2061
        %v2097 = vpack.c.b16 %v2096, %v2095
        %2098 = vrot.lane.b32.xlu0 %v2097, 56
        %v2099 = vpop.permute.xlu0 %2098
        %v2102 = vsel %vm452, %v2064, %v2069
        %v2104 = vsel %vm456, %v2102, %v2074
        %v2106 = vsel %vm459, %v2104, %v2079
        %v2108 = vsel %vm462, %v2106, %v2084
        %v2110 = vsel %vm465, %v2108, %v2089
        %v2112 = vsel %vm468, %v2110, %v2094
        %v2114 = vsel %vm471, %v2112, %v2099
        %vm2132 = vcmask 1042432
        %vm2133 = vcmask 1046532
        %vm2134 = vmor %vm2132, %vm2133
        %v2135 = vrot.slane %v198, 5
        %v2136 = vrot.slane %v2135, 4
        %v2137 = vrot.slane %v199, 5
        %v2138 = vsel %vm2134, %v2136, %v2137
        %v2139 = vrot.slane %v200, 5
        %v2140 = vrot.slane %v2139, 4
        %v2141 = vrot.slane %v201, 5
        %v2142 = vsel %vm2134, %v2140, %v2141
        %v2143 = vrot.slane %v202, 5
        %v2144 = vrot.slane %v2143, 4
        %v2145 = vrot.slane %v203, 5
        %v2146 = vsel %vm2134, %v2144, %v2145
        %v2147 = vrot.slane %v204, 5
        %v2148 = vrot.slane %v2147, 4
        %v2149 = vrot.slane %v205, 5
        %v2150 = vsel %vm2134, %v2148, %v2149
        %v2151 = vrot.slane %v206, 5
        %v2152 = vrot.slane %v2151, 4
        %v2153 = vrot.slane %v207, 5
        %v2154 = vsel %vm2134, %v2152, %v2153
        %v2155 = vrot.slane %v208, 5
        %v2156 = vrot.slane %v2155, 4
        %v2157 = vrot.slane %v209, 5
        %v2158 = vsel %vm2134, %v2156, %v2157
        %v2159 = vrot.slane %v210, 5
        %v2160 = vrot.slane %v2159, 4
        %v2161 = vrot.slane %v211, 5
        %v2162 = vsel %vm2134, %v2160, %v2161
        %v2163 = vrot.slane %v212, 5
        %v2164 = vrot.slane %v2163, 4
        %v2165 = vrot.slane %v213, 5
        %v2166 = vsel %vm2134, %v2164, %v2165
        %v2167 = vrot.slane %v214, 5
        %v2168 = vrot.slane %v2167, 4
        %v2169 = vrot.slane %v215, 5
        %v2170 = vsel %vm2134, %v2168, %v2169
        %v2171 = vrot.slane %v216, 5
        %v2172 = vrot.slane %v2171, 4
        %v2173 = vrot.slane %v217, 5
        %v2174 = vsel %vm2134, %v2172, %v2173
        %v2175 = vrot.slane %v218, 5
        %v2176 = vrot.slane %v2175, 4
        %v2177 = vrot.slane %v219, 5
        %v2178 = vsel %vm2134, %v2176, %v2177
        %v2179 = vrot.slane %v220, 5
        %v2180 = vrot.slane %v2179, 4
        %v2181 = vrot.slane %v221, 5
        %v2182 = vsel %vm2134, %v2180, %v2181
        %v2183 = vrot.slane %v222, 5
        %v2184 = vrot.slane %v2183, 4
        %v2185 = vrot.slane %v223, 5
        %v2186 = vsel %vm2134, %v2184, %v2185
        %v2187 = vrot.slane %v224, 5
        %v2188 = vrot.slane %v2187, 4
        %v2189 = vrot.slane %v225, 5
        %v2190 = vsel %vm2134, %v2188, %v2189
        %v2191 = vrot.slane %v226, 5
        %v2192 = vrot.slane %v2191, 4
        %v2193 = vrot.slane %v227, 5
        %v2194 = vsel %vm2134, %v2192, %v2193
        %v2195 = vrot.slane %v228, 5
        %v2196 = vrot.slane %v2195, 4
        %v2197 = vrot.slane %v229, 5
        %v2198 = vsel %vm2134, %v2196, %v2197
        %v2215 = vcombine.low %v2138, %v2154
        %v2217 = vunpack.c.l.s4 1983009808
        %v2218 = vunpack.c.0.s8 %v2217
        %v2219 = vlaneseq
        %v2220 = vshrl.u32 %v2219, 7
        %v2221 = vsub.s32 %v2218, %v2220
        %v2222 = vrot.slane %v2215, %v2221
        %v2223 = vcombine.low %v2146, %v2162
        %v2225 = vunpack.c.l.s4 1983009808
        %v2226 = vunpack.c.0.s8 %v2225
        %v2227 = vlaneseq
        %v2228 = vshrl.u32 %v2227, 7
        %v2229 = vsub.s32 %v2226, %v2228
        %v2230 = vrot.slane %v2223, %v2229
        %v2231 = vcombine.low %v2222, %v2230
        %v2232 = vcombine.high %v2222, %v2230
        %v2234 = vunpack.c.l.s4 1934713408
        %v2235 = vunpack.c.0.s8 %v2234
        %v2236 = vlaneseq
        %v2237 = vshrl.u32 %v2236, 7
        %v2238 = vsub.s32 %v2235, %v2237
        %v2239 = vrot.slane %v2231, %v2238
        %v2241 = vunpack.c.l.s4 1934713408
        %v2242 = vunpack.c.0.s8 %v2241
        %v2243 = vlaneseq
        %v2244 = vshrl.u32 %v2243, 7
        %v2245 = vsub.s32 %v2242, %v2244
        %v2246 = vrot.slane %v2232, %v2245
        %v2247 = vcombine.high %v2239, 0
        %v2248 = vcombine.high %v2246, 0
        %v2249 = vcombine.low %v2142, %v2158
        %v2251 = vunpack.c.l.s4 1983009808
        %v2252 = vunpack.c.0.s8 %v2251
        %v2253 = vlaneseq
        %v2254 = vshrl.u32 %v2253, 7
        %v2255 = vsub.s32 %v2252, %v2254
        %v2256 = vrot.slane %v2249, %v2255
        %v2257 = vcombine.low %v2150, %v2166
        %v2259 = vunpack.c.l.s4 1983009808
        %v2260 = vunpack.c.0.s8 %v2259
        %v2261 = vlaneseq
        %v2262 = vshrl.u32 %v2261, 7
        %v2263 = vsub.s32 %v2260, %v2262
        %v2264 = vrot.slane %v2257, %v2263
        %v2265 = vcombine.low %v2256, %v2264
        %v2266 = vcombine.high %v2256, %v2264
        %v2268 = vunpack.c.l.s4 1934713408
        %v2269 = vunpack.c.0.s8 %v2268
        %v2270 = vlaneseq
        %v2271 = vshrl.u32 %v2270, 7
        %v2272 = vsub.s32 %v2269, %v2271
        %v2273 = vrot.slane %v2265, %v2272
        %v2275 = vunpack.c.l.s4 1934713408
        %v2276 = vunpack.c.0.s8 %v2275
        %v2277 = vlaneseq
        %v2278 = vshrl.u32 %v2277, 7
        %v2279 = vsub.s32 %v2276, %v2278
        %v2280 = vrot.slane %v2266, %v2279
        %v2281 = vcombine.high %v2273, 0
        %v2282 = vcombine.high %v2280, 0
        %v2283 = vcombine.low %v2170, %v2186
        %v2285 = vunpack.c.l.s4 1983009808
        %v2286 = vunpack.c.0.s8 %v2285
        %v2287 = vlaneseq
        %v2288 = vshrl.u32 %v2287, 7
        %v2289 = vsub.s32 %v2286, %v2288
        %v2290 = vrot.slane %v2283, %v2289
        %v2291 = vcombine.low %v2178, %v2194
        %v2293 = vunpack.c.l.s4 1983009808
        %v2294 = vunpack.c.0.s8 %v2293
        %v2295 = vlaneseq
        %v2296 = vshrl.u32 %v2295, 7
        %v2297 = vsub.s32 %v2294, %v2296
        %v2298 = vrot.slane %v2291, %v2297
        %v2299 = vcombine.low %v2290, %v2298
        %v2300 = vcombine.high %v2290, %v2298
        %v2302 = vunpack.c.l.s4 1934713408
        %v2303 = vunpack.c.0.s8 %v2302
        %v2304 = vlaneseq
        %v2305 = vshrl.u32 %v2304, 7
        %v2306 = vsub.s32 %v2303, %v2305
        %v2307 = vrot.slane %v2299, %v2306
        %v2309 = vunpack.c.l.s4 1934713408
        %v2310 = vunpack.c.0.s8 %v2309
        %v2311 = vlaneseq
        %v2312 = vshrl.u32 %v2311, 7
        %v2313 = vsub.s32 %v2310, %v2312
        %v2314 = vrot.slane %v2300, %v2313
        %v2315 = vcombine.high %v2307, 0
        %v2316 = vcombine.high %v2314, 0
        %v2317 = vcombine.low %v2174, %v2190
        %v2319 = vunpack.c.l.s4 1983009808
        %v2320 = vunpack.c.0.s8 %v2319
        %v2321 = vlaneseq
        %v2322 = vshrl.u32 %v2321, 7
        %v2323 = vsub.s32 %v2320, %v2322
        %v2324 = vrot.slane %v2317, %v2323
        %v2325 = vcombine.low %v2182, %v2198
        %v2327 = vunpack.c.l.s4 1983009808
        %v2328 = vunpack.c.0.s8 %v2327
        %v2329 = vlaneseq
        %v2330 = vshrl.u32 %v2329, 7
        %v2331 = vsub.s32 %v2328, %v2330
        %v2332 = vrot.slane %v2325, %v2331
        %v2333 = vcombine.low %v2324, %v2332
        %v2334 = vcombine.high %v2324, %v2332
        %v2336 = vunpack.c.l.s4 1934713408
        %v2337 = vunpack.c.0.s8 %v2336
        %v2338 = vlaneseq
        %v2339 = vshrl.u32 %v2338, 7
        %v2340 = vsub.s32 %v2337, %v2339
        %v2341 = vrot.slane %v2333, %v2340
        %v2343 = vunpack.c.l.s4 1934713408
        %v2344 = vunpack.c.0.s8 %v2343
        %v2345 = vlaneseq
        %v2346 = vshrl.u32 %v2345, 7
        %v2347 = vsub.s32 %v2344, %v2346
        %v2348 = vrot.slane %v2334, %v2347
        %v2349 = vcombine.high %v2341, 0
        %v2350 = vcombine.high %v2348, 0
        %v2353 = vpack.i.b16 %v2273, %v2239
        %v2354 = vshrl.u32 %v2239, 16
        %v2355 = vshrl.u32 %v2273, 16
        %v2356 = vpack.i.b16 %v2355, %v2354
        %v2359 = vpack.i.b16 %v2281, %v2247
        %v2360 = vshrl.u32 %v2247, 16
        %v2361 = vshrl.u32 %v2281, 16
        %v2362 = vpack.i.b16 %v2361, %v2360
        %v2365 = vpack.i.b16 %v2280, %v2246
        %v2366 = vshrl.u32 %v2246, 16
        %v2367 = vshrl.u32 %v2280, 16
        %v2368 = vpack.i.b16 %v2367, %v2366
        %v2371 = vpack.i.b16 %v2282, %v2248
        %v2372 = vshrl.u32 %v2248, 16
        %v2373 = vshrl.u32 %v2282, 16
        %v2374 = vpack.i.b16 %v2373, %v2372
        %v2377 = vpack.i.b16 %v2341, %v2307
        %v2378 = vshrl.u32 %v2307, 16
        %v2379 = vshrl.u32 %v2341, 16
        %v2380 = vpack.i.b16 %v2379, %v2378
        %v2383 = vpack.i.b16 %v2349, %v2315
        %v2384 = vshrl.u32 %v2315, 16
        %v2385 = vshrl.u32 %v2349, 16
        %v2386 = vpack.i.b16 %v2385, %v2384
        %v2389 = vpack.i.b16 %v2348, %v2314
        %v2390 = vshrl.u32 %v2314, 16
        %v2391 = vshrl.u32 %v2348, 16
        %v2392 = vpack.i.b16 %v2391, %v2390
        %v2395 = vpack.i.b16 %v2350, %v2316
        %v2396 = vshrl.u32 %v2316, 16
        %v2397 = vshrl.u32 %v2350, 16
        %v2398 = vpack.i.b16 %v2397, %v2396
        %v2399 = vunpack.c.l.b16 %v2353
        %v2400 = vunpack.c.l.b16 %v2377
        %v2401 = vpack.c.b16 %v2400, %v2399
        %v2402 = vunpack.c.l.b16 %v2356
        %v2403 = vunpack.c.l.b16 %v2380
        %v2404 = vpack.c.b16 %v2403, %v2402
        %2405 = vrot.lane.b32.xlu0 %v2404, 8
        %v2406 = vpop.permute.xlu0 %2405
        %v2407 = vunpack.c.l.b16 %v2359
        %v2408 = vunpack.c.l.b16 %v2383
        %v2409 = vpack.c.b16 %v2408, %v2407
        %2410 = vrot.lane.b32.xlu0 %v2409, 16
        %v2411 = vpop.permute.xlu0 %2410
        %v2412 = vunpack.c.l.b16 %v2362
        %v2413 = vunpack.c.l.b16 %v2386
        %v2414 = vpack.c.b16 %v2413, %v2412
        %2415 = vrot.lane.b32.xlu0 %v2414, 24
        %v2416 = vpop.permute.xlu0 %2415
        %v2417 = vunpack.c.l.b16 %v2365
        %v2418 = vunpack.c.l.b16 %v2389
        %v2419 = vpack.c.b16 %v2418, %v2417
        %2420 = vrot.lane.b32.xlu0 %v2419, 32
        %v2421 = vpop.permute.xlu0 %2420
        %v2422 = vunpack.c.l.b16 %v2368
        %v2423 = vunpack.c.l.b16 %v2392
        %v2424 = vpack.c.b16 %v2423, %v2422
        %2425 = vrot.lane.b32.xlu0 %v2424, 40
        %v2426 = vpop.permute.xlu0 %2425
        %v2427 = vunpack.c.l.b16 %v2371
        %v2428 = vunpack.c.l.b16 %v2395
        %v2429 = vpack.c.b16 %v2428, %v2427
        %2430 = vrot.lane.b32.xlu0 %v2429, 48
        %v2431 = vpop.permute.xlu0 %2430
        %v2432 = vunpack.c.l.b16 %v2374
        %v2433 = vunpack.c.l.b16 %v2398
        %v2434 = vpack.c.b16 %v2433, %v2432
        %2435 = vrot.lane.b32.xlu0 %v2434, 56
        %v2436 = vpop.permute.xlu0 %2435
        %v2439 = vsel %vm452, %v2401, %v2406
        %v2441 = vsel %vm456, %v2439, %v2411
        %v2443 = vsel %vm459, %v2441, %v2416
        %v2445 = vsel %vm462, %v2443, %v2421
        %v2447 = vsel %vm465, %v2445, %v2426
        %v2449 = vsel %vm468, %v2447, %v2431
        %v2451 = vsel %vm471, %v2449, %v2436
        %2453 = vrot.lane.b32.xlu0 %v2138, 127
        %v2454 = vpop.permute.xlu0 %2453
        %2455 = vrot.lane.b32.xlu0 %v2142, 127
        %v2456 = vpop.permute.xlu0 %2455
        %2457 = vrot.lane.b32.xlu0 %v2146, 127
        %v2458 = vpop.permute.xlu0 %2457
        %2459 = vrot.lane.b32.xlu0 %v2150, 127
        %v2460 = vpop.permute.xlu0 %2459
        %2461 = vrot.lane.b32.xlu0 %v2154, 127
        %v2462 = vpop.permute.xlu0 %2461
        %2463 = vrot.lane.b32.xlu0 %v2158, 127
        %v2464 = vpop.permute.xlu0 %2463
        %2465 = vrot.lane.b32.xlu0 %v2162, 127
        %v2466 = vpop.permute.xlu0 %2465
        %2467 = vrot.lane.b32.xlu0 %v2166, 127
        %v2468 = vpop.permute.xlu0 %2467
        %2469 = vrot.lane.b32.xlu0 %v2170, 127
        %v2470 = vpop.permute.xlu0 %2469
        %2471 = vrot.lane.b32.xlu0 %v2174, 127
        %v2472 = vpop.permute.xlu0 %2471
        %2473 = vrot.lane.b32.xlu0 %v2178, 127
        %v2474 = vpop.permute.xlu0 %2473
        %2475 = vrot.lane.b32.xlu0 %v2182, 127
        %v2476 = vpop.permute.xlu0 %2475
        %2477 = vrot.lane.b32.xlu0 %v2186, 127
        %v2478 = vpop.permute.xlu0 %2477
        %2479 = vrot.lane.b32.xlu0 %v2190, 127
        %v2480 = vpop.permute.xlu0 %2479
        %2481 = vrot.lane.b32.xlu0 %v2194, 127
        %v2482 = vpop.permute.xlu0 %2481
        %2483 = vrot.lane.b32.xlu0 %v2198, 127
        %v2484 = vpop.permute.xlu0 %2483
        %v2501 = vcombine.low %v2454, %v2462
        %v2503 = vunpack.c.l.s4 1983009808
        %v2504 = vunpack.c.0.s8 %v2503
        %v2505 = vlaneseq
        %v2506 = vshrl.u32 %v2505, 7
        %v2507 = vsub.s32 %v2504, %v2506
        %v2508 = vrot.slane %v2501, %v2507
        %v2509 = vcombine.low %v2458, %v2466
        %v2511 = vunpack.c.l.s4 1983009808
        %v2512 = vunpack.c.0.s8 %v2511
        %v2513 = vlaneseq
        %v2514 = vshrl.u32 %v2513, 7
        %v2515 = vsub.s32 %v2512, %v2514
        %v2516 = vrot.slane %v2509, %v2515
        %v2517 = vcombine.low %v2508, %v2516
        %v2518 = vcombine.high %v2508, %v2516
        %v2520 = vunpack.c.l.s4 1934713408
        %v2521 = vunpack.c.0.s8 %v2520
        %v2522 = vlaneseq
        %v2523 = vshrl.u32 %v2522, 7
        %v2524 = vsub.s32 %v2521, %v2523
        %v2525 = vrot.slane %v2517, %v2524
        %v2527 = vunpack.c.l.s4 1934713408
        %v2528 = vunpack.c.0.s8 %v2527
        %v2529 = vlaneseq
        %v2530 = vshrl.u32 %v2529, 7
        %v2531 = vsub.s32 %v2528, %v2530
        %v2532 = vrot.slane %v2518, %v2531
        %v2533 = vcombine.high %v2525, 0
        %v2534 = vcombine.high %v2532, 0
        %v2535 = vcombine.low %v2456, %v2464
        %v2537 = vunpack.c.l.s4 1983009808
        %v2538 = vunpack.c.0.s8 %v2537
        %v2539 = vlaneseq
        %v2540 = vshrl.u32 %v2539, 7
        %v2541 = vsub.s32 %v2538, %v2540
        %v2542 = vrot.slane %v2535, %v2541
        %v2543 = vcombine.low %v2460, %v2468
        %v2545 = vunpack.c.l.s4 1983009808
        %v2546 = vunpack.c.0.s8 %v2545
        %v2547 = vlaneseq
        %v2548 = vshrl.u32 %v2547, 7
        %v2549 = vsub.s32 %v2546, %v2548
        %v2550 = vrot.slane %v2543, %v2549
        %v2551 = vcombine.low %v2542, %v2550
        %v2552 = vcombine.high %v2542, %v2550
        %v2554 = vunpack.c.l.s4 1934713408
        %v2555 = vunpack.c.0.s8 %v2554
        %v2556 = vlaneseq
        %v2557 = vshrl.u32 %v2556, 7
        %v2558 = vsub.s32 %v2555, %v2557
        %v2559 = vrot.slane %v2551, %v2558
        %v2561 = vunpack.c.l.s4 1934713408
        %v2562 = vunpack.c.0.s8 %v2561
        %v2563 = vlaneseq
        %v2564 = vshrl.u32 %v2563, 7
        %v2565 = vsub.s32 %v2562, %v2564
        %v2566 = vrot.slane %v2552, %v2565
        %v2567 = vcombine.high %v2559, 0
        %v2568 = vcombine.high %v2566, 0
        %v2569 = vcombine.low %v2470, %v2478
        %v2571 = vunpack.c.l.s4 1983009808
        %v2572 = vunpack.c.0.s8 %v2571
        %v2573 = vlaneseq
        %v2574 = vshrl.u32 %v2573, 7
        %v2575 = vsub.s32 %v2572, %v2574
        %v2576 = vrot.slane %v2569, %v2575
        %v2577 = vcombine.low %v2474, %v2482
        %v2579 = vunpack.c.l.s4 1983009808
        %v2580 = vunpack.c.0.s8 %v2579
        %v2581 = vlaneseq
        %v2582 = vshrl.u32 %v2581, 7
        %v2583 = vsub.s32 %v2580, %v2582
        %v2584 = vrot.slane %v2577, %v2583
        %v2585 = vcombine.low %v2576, %v2584
        %v2586 = vcombine.high %v2576, %v2584
        %v2588 = vunpack.c.l.s4 1934713408
        %v2589 = vunpack.c.0.s8 %v2588
        %v2590 = vlaneseq
        %v2591 = vshrl.u32 %v2590, 7
        %v2592 = vsub.s32 %v2589, %v2591
        %v2593 = vrot.slane %v2585, %v2592
        %v2595 = vunpack.c.l.s4 1934713408
        %v2596 = vunpack.c.0.s8 %v2595
        %v2597 = vlaneseq
        %v2598 = vshrl.u32 %v2597, 7
        %v2599 = vsub.s32 %v2596, %v2598
        %v2600 = vrot.slane %v2586, %v2599
        %v2601 = vcombine.high %v2593, 0
        %v2602 = vcombine.high %v2600, 0
        %v2603 = vcombine.low %v2472, %v2480
        %v2605 = vunpack.c.l.s4 1983009808
        %v2606 = vunpack.c.0.s8 %v2605
        %v2607 = vlaneseq
        %v2608 = vshrl.u32 %v2607, 7
        %v2609 = vsub.s32 %v2606, %v2608
        %v2610 = vrot.slane %v2603, %v2609
        %v2611 = vcombine.low %v2476, %v2484
        %v2613 = vunpack.c.l.s4 1983009808
        %v2614 = vunpack.c.0.s8 %v2613
        %v2615 = vlaneseq
        %v2616 = vshrl.u32 %v2615, 7
        %v2617 = vsub.s32 %v2614, %v2616
        %v2618 = vrot.slane %v2611, %v2617
        %v2619 = vcombine.low %v2610, %v2618
        %v2620 = vcombine.high %v2610, %v2618
        %v2622 = vunpack.c.l.s4 1934713408
        %v2623 = vunpack.c.0.s8 %v2622
        %v2624 = vlaneseq
        %v2625 = vshrl.u32 %v2624, 7
        %v2626 = vsub.s32 %v2623, %v2625
        %v2627 = vrot.slane %v2619, %v2626
        %v2629 = vunpack.c.l.s4 1934713408
        %v2630 = vunpack.c.0.s8 %v2629
        %v2631 = vlaneseq
        %v2632 = vshrl.u32 %v2631, 7
        %v2633 = vsub.s32 %v2630, %v2632
        %v2634 = vrot.slane %v2620, %v2633
        %v2635 = vcombine.high %v2627, 0
        %v2636 = vcombine.high %v2634, 0
        %v2639 = vpack.i.b16 %v2559, %v2525
        %v2640 = vshrl.u32 %v2525, 16
        %v2641 = vshrl.u32 %v2559, 16
        %v2642 = vpack.i.b16 %v2641, %v2640
        %v2645 = vpack.i.b16 %v2567, %v2533
        %v2646 = vshrl.u32 %v2533, 16
        %v2647 = vshrl.u32 %v2567, 16
        %v2648 = vpack.i.b16 %v2647, %v2646
        %v2651 = vpack.i.b16 %v2566, %v2532
        %v2652 = vshrl.u32 %v2532, 16
        %v2653 = vshrl.u32 %v2566, 16
        %v2654 = vpack.i.b16 %v2653, %v2652
        %v2657 = vpack.i.b16 %v2568, %v2534
        %v2658 = vshrl.u32 %v2534, 16
        %v2659 = vshrl.u32 %v2568, 16
        %v2660 = vpack.i.b16 %v2659, %v2658
        %v2663 = vpack.i.b16 %v2627, %v2593
        %v2664 = vshrl.u32 %v2593, 16
        %v2665 = vshrl.u32 %v2627, 16
        %v2666 = vpack.i.b16 %v2665, %v2664
        %v2669 = vpack.i.b16 %v2635, %v2601
        %v2670 = vshrl.u32 %v2601, 16
        %v2671 = vshrl.u32 %v2635, 16
        %v2672 = vpack.i.b16 %v2671, %v2670
        %v2675 = vpack.i.b16 %v2634, %v2600
        %v2676 = vshrl.u32 %v2600, 16
        %v2677 = vshrl.u32 %v2634, 16
        %v2678 = vpack.i.b16 %v2677, %v2676
        %v2681 = vpack.i.b16 %v2636, %v2602
        %v2682 = vshrl.u32 %v2602, 16
        %v2683 = vshrl.u32 %v2636, 16
        %v2684 = vpack.i.b16 %v2683, %v2682
        %v2685 = vunpack.c.l.b16 %v2639
        %v2686 = vunpack.c.l.b16 %v2663
        %v2687 = vpack.c.b16 %v2686, %v2685
        %v2688 = vunpack.c.l.b16 %v2642
        %v2689 = vunpack.c.l.b16 %v2666
        %v2690 = vpack.c.b16 %v2689, %v2688
        %2691 = vrot.lane.b32.xlu0 %v2690, 8
        %v2692 = vpop.permute.xlu0 %2691
        %v2693 = vunpack.c.l.b16 %v2645
        %v2694 = vunpack.c.l.b16 %v2669
        %v2695 = vpack.c.b16 %v2694, %v2693
        %2696 = vrot.lane.b32.xlu0 %v2695, 16
        %v2697 = vpop.permute.xlu0 %2696
        %v2698 = vunpack.c.l.b16 %v2648
        %v2699 = vunpack.c.l.b16 %v2672
        %v2700 = vpack.c.b16 %v2699, %v2698
        %2701 = vrot.lane.b32.xlu0 %v2700, 24
        %v2702 = vpop.permute.xlu0 %2701
        %v2703 = vunpack.c.l.b16 %v2651
        %v2704 = vunpack.c.l.b16 %v2675
        %v2705 = vpack.c.b16 %v2704, %v2703
        %2706 = vrot.lane.b32.xlu0 %v2705, 32
        %v2707 = vpop.permute.xlu0 %2706
        %v2708 = vunpack.c.l.b16 %v2654
        %v2709 = vunpack.c.l.b16 %v2678
        %v2710 = vpack.c.b16 %v2709, %v2708
        %2711 = vrot.lane.b32.xlu0 %v2710, 40
        %v2712 = vpop.permute.xlu0 %2711
        %v2713 = vunpack.c.l.b16 %v2657
        %v2714 = vunpack.c.l.b16 %v2681
        %v2715 = vpack.c.b16 %v2714, %v2713
        %2716 = vrot.lane.b32.xlu0 %v2715, 48
        %v2717 = vpop.permute.xlu0 %2716
        %v2718 = vunpack.c.l.b16 %v2660
        %v2719 = vunpack.c.l.b16 %v2684
        %v2720 = vpack.c.b16 %v2719, %v2718
        %2721 = vrot.lane.b32.xlu0 %v2720, 56
        %v2722 = vpop.permute.xlu0 %2721
        %v2725 = vsel %vm452, %v2687, %v2692
        %v2727 = vsel %vm456, %v2725, %v2697
        %v2729 = vsel %vm459, %v2727, %v2702
        %v2731 = vsel %vm462, %v2729, %v2707
        %v2733 = vsel %vm465, %v2731, %v2712
        %v2735 = vsel %vm468, %v2733, %v2717
        %v2737 = vsel %vm471, %v2735, %v2722
        %2739 = vrot.lane.b32.xlu0 %v2138, 126
        %v2740 = vpop.permute.xlu0 %2739
        %2741 = vrot.lane.b32.xlu0 %v2142, 126
        %v2742 = vpop.permute.xlu0 %2741
        %2743 = vrot.lane.b32.xlu0 %v2146, 126
        %v2744 = vpop.permute.xlu0 %2743
        %2745 = vrot.lane.b32.xlu0 %v2150, 126
        %v2746 = vpop.permute.xlu0 %2745
        %2747 = vrot.lane.b32.xlu0 %v2154, 126
        %v2748 = vpop.permute.xlu0 %2747
        %2749 = vrot.lane.b32.xlu0 %v2158, 126
        %v2750 = vpop.permute.xlu0 %2749
        %2751 = vrot.lane.b32.xlu0 %v2162, 126
        %v2752 = vpop.permute.xlu0 %2751
        %2753 = vrot.lane.b32.xlu0 %v2166, 126
        %v2754 = vpop.permute.xlu0 %2753
        %2755 = vrot.lane.b32.xlu0 %v2170, 126
        %v2756 = vpop.permute.xlu0 %2755
        %2757 = vrot.lane.b32.xlu0 %v2174, 126
        %v2758 = vpop.permute.xlu0 %2757
        %2759 = vrot.lane.b32.xlu0 %v2178, 126
        %v2760 = vpop.permute.xlu0 %2759
        %2761 = vrot.lane.b32.xlu0 %v2182, 126
        %v2762 = vpop.permute.xlu0 %2761
        %2763 = vrot.lane.b32.xlu0 %v2186, 126
        %v2764 = vpop.permute.xlu0 %2763
        %2765 = vrot.lane.b32.xlu0 %v2190, 126
        %v2766 = vpop.permute.xlu0 %2765
        %2767 = vrot.lane.b32.xlu0 %v2194, 126
        %v2768 = vpop.permute.xlu0 %2767
        %2769 = vrot.lane.b32.xlu0 %v2198, 126
        %v2770 = vpop.permute.xlu0 %2769
        %v2787 = vcombine.low %v2740, %v2748
        %v2789 = vunpack.c.l.s4 1983009808
        %v2790 = vunpack.c.0.s8 %v2789
        %v2791 = vlaneseq
        %v2792 = vshrl.u32 %v2791, 7
        %v2793 = vsub.s32 %v2790, %v2792
        %v2794 = vrot.slane %v2787, %v2793
        %v2795 = vcombine.low %v2744, %v2752
        %v2797 = vunpack.c.l.s4 1983009808
        %v2798 = vunpack.c.0.s8 %v2797
        %v2799 = vlaneseq
        %v2800 = vshrl.u32 %v2799, 7
        %v2801 = vsub.s32 %v2798, %v2800
        %v2802 = vrot.slane %v2795, %v2801
        %v2803 = vcombine.low %v2794, %v2802
        %v2804 = vcombine.high %v2794, %v2802
        %v2806 = vunpack.c.l.s4 1934713408
        %v2807 = vunpack.c.0.s8 %v2806
        %v2808 = vlaneseq
        %v2809 = vshrl.u32 %v2808, 7
        %v2810 = vsub.s32 %v2807, %v2809
        %v2811 = vrot.slane %v2803, %v2810
        %v2813 = vunpack.c.l.s4 1934713408
        %v2814 = vunpack.c.0.s8 %v2813
        %v2815 = vlaneseq
        %v2816 = vshrl.u32 %v2815, 7
        %v2817 = vsub.s32 %v2814, %v2816
        %v2818 = vrot.slane %v2804, %v2817
        %v2819 = vcombine.high %v2811, 0
        %v2820 = vcombine.high %v2818, 0
        %v2821 = vcombine.low %v2742, %v2750
        %v2823 = vunpack.c.l.s4 1983009808
        %v2824 = vunpack.c.0.s8 %v2823
        %v2825 = vlaneseq
        %v2826 = vshrl.u32 %v2825, 7
        %v2827 = vsub.s32 %v2824, %v2826
        %v2828 = vrot.slane %v2821, %v2827
        %v2829 = vcombine.low %v2746, %v2754
        %v2831 = vunpack.c.l.s4 1983009808
        %v2832 = vunpack.c.0.s8 %v2831
        %v2833 = vlaneseq
        %v2834 = vshrl.u32 %v2833, 7
        %v2835 = vsub.s32 %v2832, %v2834
        %v2836 = vrot.slane %v2829, %v2835
        %v2837 = vcombine.low %v2828, %v2836
        %v2838 = vcombine.high %v2828, %v2836
        %v2840 = vunpack.c.l.s4 1934713408
        %v2841 = vunpack.c.0.s8 %v2840
        %v2842 = vlaneseq
        %v2843 = vshrl.u32 %v2842, 7
        %v2844 = vsub.s32 %v2841, %v2843
        %v2845 = vrot.slane %v2837, %v2844
        %v2847 = vunpack.c.l.s4 1934713408
        %v2848 = vunpack.c.0.s8 %v2847
        %v2849 = vlaneseq
        %v2850 = vshrl.u32 %v2849, 7
        %v2851 = vsub.s32 %v2848, %v2850
        %v2852 = vrot.slane %v2838, %v2851
        %v2853 = vcombine.high %v2845, 0
        %v2854 = vcombine.high %v2852, 0
        %v2855 = vcombine.low %v2756, %v2764
        %v2857 = vunpack.c.l.s4 1983009808
        %v2858 = vunpack.c.0.s8 %v2857
        %v2859 = vlaneseq
        %v2860 = vshrl.u32 %v2859, 7
        %v2861 = vsub.s32 %v2858, %v2860
        %v2862 = vrot.slane %v2855, %v2861
        %v2863 = vcombine.low %v2760, %v2768
        %v2865 = vunpack.c.l.s4 1983009808
        %v2866 = vunpack.c.0.s8 %v2865
        %v2867 = vlaneseq
        %v2868 = vshrl.u32 %v2867, 7
        %v2869 = vsub.s32 %v2866, %v2868
        %v2870 = vrot.slane %v2863, %v2869
        %v2871 = vcombine.low %v2862, %v2870
        %v2872 = vcombine.high %v2862, %v2870
        %v2874 = vunpack.c.l.s4 1934713408
        %v2875 = vunpack.c.0.s8 %v2874
        %v2876 = vlaneseq
        %v2877 = vshrl.u32 %v2876, 7
        %v2878 = vsub.s32 %v2875, %v2877
        %v2879 = vrot.slane %v2871, %v2878
        %v2881 = vunpack.c.l.s4 1934713408
        %v2882 = vunpack.c.0.s8 %v2881
        %v2883 = vlaneseq
        %v2884 = vshrl.u32 %v2883, 7
        %v2885 = vsub.s32 %v2882, %v2884
        %v2886 = vrot.slane %v2872, %v2885
        %v2887 = vcombine.high %v2879, 0
        %v2888 = vcombine.high %v2886, 0
        %v2889 = vcombine.low %v2758, %v2766
        %v2891 = vunpack.c.l.s4 1983009808
        %v2892 = vunpack.c.0.s8 %v2891
        %v2893 = vlaneseq
        %v2894 = vshrl.u32 %v2893, 7
        %v2895 = vsub.s32 %v2892, %v2894
        %v2896 = vrot.slane %v2889, %v2895
        %v2897 = vcombine.low %v2762, %v2770
        %v2899 = vunpack.c.l.s4 1983009808
        %v2900 = vunpack.c.0.s8 %v2899
        %v2901 = vlaneseq
        %v2902 = vshrl.u32 %v2901, 7
        %v2903 = vsub.s32 %v2900, %v2902
        %v2904 = vrot.slane %v2897, %v2903
        %v2905 = vcombine.low %v2896, %v2904
        %v2906 = vcombine.high %v2896, %v2904
        %v2908 = vunpack.c.l.s4 1934713408
        %v2909 = vunpack.c.0.s8 %v2908
        %v2910 = vlaneseq
        %v2911 = vshrl.u32 %v2910, 7
        %v2912 = vsub.s32 %v2909, %v2911
        %v2913 = vrot.slane %v2905, %v2912
        %v2915 = vunpack.c.l.s4 1934713408
        %v2916 = vunpack.c.0.s8 %v2915
        %v2917 = vlaneseq
        %v2918 = vshrl.u32 %v2917, 7
        %v2919 = vsub.s32 %v2916, %v2918
        %v2920 = vrot.slane %v2906, %v2919
        %v2921 = vcombine.high %v2913, 0
        %v2922 = vcombine.high %v2920, 0
        %v2925 = vpack.i.b16 %v2845, %v2811
        %v2926 = vshrl.u32 %v2811, 16
        %v2927 = vshrl.u32 %v2845, 16
        %v2928 = vpack.i.b16 %v2927, %v2926
        %v2931 = vpack.i.b16 %v2853, %v2819
        %v2932 = vshrl.u32 %v2819, 16
        %v2933 = vshrl.u32 %v2853, 16
        %v2934 = vpack.i.b16 %v2933, %v2932
        %v2937 = vpack.i.b16 %v2852, %v2818
        %v2938 = vshrl.u32 %v2818, 16
        %v2939 = vshrl.u32 %v2852, 16
        %v2940 = vpack.i.b16 %v2939, %v2938
        %v2943 = vpack.i.b16 %v2854, %v2820
        %v2944 = vshrl.u32 %v2820, 16
        %v2945 = vshrl.u32 %v2854, 16
        %v2946 = vpack.i.b16 %v2945, %v2944
        %v2949 = vpack.i.b16 %v2913, %v2879
        %v2950 = vshrl.u32 %v2879, 16
        %v2951 = vshrl.u32 %v2913, 16
        %v2952 = vpack.i.b16 %v2951, %v2950
        %v2955 = vpack.i.b16 %v2921, %v2887
        %v2956 = vshrl.u32 %v2887, 16
        %v2957 = vshrl.u32 %v2921, 16
        %v2958 = vpack.i.b16 %v2957, %v2956
        %v2961 = vpack.i.b16 %v2920, %v2886
        %v2962 = vshrl.u32 %v2886, 16
        %v2963 = vshrl.u32 %v2920, 16
        %v2964 = vpack.i.b16 %v2963, %v2962
        %v2967 = vpack.i.b16 %v2922, %v2888
        %v2968 = vshrl.u32 %v2888, 16
        %v2969 = vshrl.u32 %v2922, 16
        %v2970 = vpack.i.b16 %v2969, %v2968
        %v2971 = vunpack.c.l.b16 %v2925
        %v2972 = vunpack.c.l.b16 %v2949
        %v2973 = vpack.c.b16 %v2972, %v2971
        %v2974 = vunpack.c.l.b16 %v2928
        %v2975 = vunpack.c.l.b16 %v2952
        %v2976 = vpack.c.b16 %v2975, %v2974
        %2977 = vrot.lane.b32.xlu0 %v2976, 8
        %v2978 = vpop.permute.xlu0 %2977
        %v2979 = vunpack.c.l.b16 %v2931
        %v2980 = vunpack.c.l.b16 %v2955
        %v2981 = vpack.c.b16 %v2980, %v2979
        %2982 = vrot.lane.b32.xlu0 %v2981, 16
        %v2983 = vpop.permute.xlu0 %2982
        %v2984 = vunpack.c.l.b16 %v2934
        %v2985 = vunpack.c.l.b16 %v2958
        %v2986 = vpack.c.b16 %v2985, %v2984
        %2987 = vrot.lane.b32.xlu0 %v2986, 24
        %v2988 = vpop.permute.xlu0 %2987
        %v2989 = vunpack.c.l.b16 %v2937
        %v2990 = vunpack.c.l.b16 %v2961
        %v2991 = vpack.c.b16 %v2990, %v2989
        %2992 = vrot.lane.b32.xlu0 %v2991, 32
        %v2993 = vpop.permute.xlu0 %2992
        %v2994 = vunpack.c.l.b16 %v2940
        %v2995 = vunpack.c.l.b16 %v2964
        %v2996 = vpack.c.b16 %v2995, %v2994
        %2997 = vrot.lane.b32.xlu0 %v2996, 40
        %v2998 = vpop.permute.xlu0 %2997
        %v2999 = vunpack.c.l.b16 %v2943
        %v3000 = vunpack.c.l.b16 %v2967
        %v3001 = vpack.c.b16 %v3000, %v2999
        %3002 = vrot.lane.b32.xlu0 %v3001, 48
        %v3003 = vpop.permute.xlu0 %3002
        %v3004 = vunpack.c.l.b16 %v2946
        %v3005 = vunpack.c.l.b16 %v2970
        %v3006 = vpack.c.b16 %v3005, %v3004
        %3007 = vrot.lane.b32.xlu0 %v3006, 56
        %v3008 = vpop.permute.xlu0 %3007
        %v3011 = vsel %vm452, %v2973, %v2978
        %v3013 = vsel %vm456, %v3011, %v2983
        %v3015 = vsel %vm459, %v3013, %v2988
        %v3017 = vsel %vm462, %v3015, %v2993
        %v3019 = vsel %vm465, %v3017, %v2998
        %v3021 = vsel %vm468, %v3019, %v3003
        %v3023 = vsel %vm471, %v3021, %v3008
        %v3025 = vld [vmem:[%s1] sm:$0xff]
        %v3026 = vld [vmem:[%s2] sm:$0xff]
        %3028 = vset.pattern.permute.xlu0 0
        %3029 = vperm.xlu0 %3028, %v3026
        %v3030 = vpop.permute.xlu0 %3029
        %v3033 = vunpack.c.l.b16 %v3025
        %v3034 = vunpack.c.h.b16 %v3025
        %v3035 = vpack.c.b16 %v3033, %v3033
        %v3036 = vpack.c.b16 %v3034, %v3034
        %v3039 = vsel %vm456, %v3036, 0
        %3041 = vmatprep.subr.bf16.mxu0 0
        %3042 = vmatpush1.bf16.msra.mxu0 %v473
        %3043 = vmatprep.subr.bf16.mxu0 0
        %3044 = vmatpush1.bf16.msra.mxu0 %v775
        %3045 = vmatprep.subr.bf16.mxu0 0
        %3046 = vmatpush1.bf16.msra.mxu0 %v1061
        %3047 = vmatprep.subr.bf16.mxu0 0
        %3048 = vmatpush1.bf16.msra.mxu0 %v1542
        %3049 = vmatprep.subr.bf16.mxu0 0
        %3050 = vmatpush1.bf16.msra.mxu0 %v1828
        %3051 = vmatprep.subr.bf16.mxu0 0
        %3052 = vmatpush1.bf16.msra.mxu0 %v2114
        %3053 = vmatprep.subr.bf16.mxu0 0
        %3054 = vmatpush1.bf16.msra.mxu0 %v2451
        %3055 = vmatprep.subr.bf16.mxu0 0
        %3056 = vmatpush1.bf16.msra.mxu0 %v2737
        %3057 = vmatprep.subr.bf16.mxu0 0
        %3058 = vmatpush1.bf16.msra.mxu0 %v3023
        %3059 = vmatprep.subr.bf16.mxu0 0
        %3060 = vmatpush1.bf16.msra.mxu0 0
        %3061 = vmatprep.subr.bf16.mxu0 0
        %3062 = vmatpush1.bf16.msra.mxu0 0
        %3063 = vmatprep.subr.bf16.mxu0 0
        %3064 = vmatpush1.bf16.msra.mxu0 0
        %3065 = vmatprep.subr.bf16.mxu0 0
        %3066 = vmatpush1.bf16.msra.mxu0 0
        %3067 = vmatprep.subr.bf16.mxu0 0
        %3068 = vmatpush1.bf16.msra.mxu0 0
        %3069 = vmatprep.subr.bf16.mxu0 0
        %3070 = vmatpush1.bf16.msra.mxu0 0
        %3071 = vmatprep.subr.bf16.mxu0 0
        %3072 = vmatpush1.bf16.msra.mxu0 0
        %3073 = vmatprep.mubr.bf16.mxu0 %v3039
        %3074 = vmatmul.mubr.bf16.gmra.mrb[0].mxu0 %v3035
        %v3075 = vpop.f32.mrb[0].mxu0
        %v3076 = vadd.f32 %v3030, %v3075
        %v3077 = vpop.f32.mrb[0].mxu0
        %v3078 = vpop.f32.mrb[0].mxu0
        %v3079 = vpop.f32.mrb[0].mxu0
        %3080 = vdwg.mxu0
        %vm3081 = vcmp.gt.f32.partialorder %v3076, 0.0
        %v3082 = vmul.f32 %v3076, 0.01
        %v3083 = vsel %vm3081, %v3076, %v3082
        %3085 = vrot.lane.b32.xlu0 %v3083, 120
        %v3086 = vpop.permute.xlu0 %3085
        %3088 = vrot.lane.b32.xlu0 %v3083, 112
        %v3089 = vpop.permute.xlu0 %3088
        %3091 = vrot.lane.b32.xlu0 %v3083, 104
        %v3092 = vpop.permute.xlu0 %3091
        %3094 = vrot.lane.b32.xlu0 %v3083, 96
        %v3095 = vpop.permute.xlu0 %3094
        %3097 = vrot.lane.b32.xlu0 %v3083, 88
        %v3098 = vpop.permute.xlu0 %3097
        %3100 = vrot.lane.b32.xlu0 %v3083, 80
        %v3101 = vpop.permute.xlu0 %3100
        %3103 = vrot.lane.b32.xlu0 %v3083, 72
        %v3104 = vpop.permute.xlu0 %3103
        %v3106 = vcombine.low %v3083, %v3089
        %v3107 = vcombine.high %v3083, %v3089
        %v3109 = vunpack.c.l.s4 1983009808
        %v3110 = vunpack.c.0.s8 %v3109
        %v3111 = vlaneseq
        %v3112 = vshrl.u32 %v3111, 7
        %v3113 = vsub.s32 %v3110, %v3112
        %v3114 = vrot.slane %v3106, %v3113
        %v3116 = vunpack.c.l.s4 1983009808
        %v3117 = vunpack.c.0.s8 %v3116
        %v3118 = vlaneseq
        %v3119 = vshrl.u32 %v3118, 7
        %v3120 = vsub.s32 %v3117, %v3119
        %v3121 = vrot.slane %v3107, %v3120
        %v3122 = vcombine.low %v3086, %v3092
        %v3123 = vcombine.high %v3086, %v3092
        %v3125 = vunpack.c.l.s4 1983009808
        %v3126 = vunpack.c.0.s8 %v3125
        %v3127 = vlaneseq
        %v3128 = vshrl.u32 %v3127, 7
        %v3129 = vsub.s32 %v3126, %v3128
        %v3130 = vrot.slane %v3122, %v3129
        %v3132 = vunpack.c.l.s4 1983009808
        %v3133 = vunpack.c.0.s8 %v3132
        %v3134 = vlaneseq
        %v3135 = vshrl.u32 %v3134, 7
        %v3136 = vsub.s32 %v3133, %v3135
        %v3137 = vrot.slane %v3123, %v3136
        %v3138 = vcombine.low %v3095, %v3101
        %v3139 = vcombine.high %v3095, %v3101
        %v3141 = vunpack.c.l.s4 1983009808
        %v3142 = vunpack.c.0.s8 %v3141
        %v3143 = vlaneseq
        %v3144 = vshrl.u32 %v3143, 7
        %v3145 = vsub.s32 %v3142, %v3144
        %v3146 = vrot.slane %v3138, %v3145
        %v3148 = vunpack.c.l.s4 1983009808
        %v3149 = vunpack.c.0.s8 %v3148
        %v3150 = vlaneseq
        %v3151 = vshrl.u32 %v3150, 7
        %v3152 = vsub.s32 %v3149, %v3151
        %v3153 = vrot.slane %v3139, %v3152
        %v3154 = vcombine.low %v3098, %v3104
        %v3155 = vcombine.high %v3098, %v3104
        %v3157 = vunpack.c.l.s4 1983009808
        %v3158 = vunpack.c.0.s8 %v3157
        %v3159 = vlaneseq
        %v3160 = vshrl.u32 %v3159, 7
        %v3161 = vsub.s32 %v3158, %v3160
        %v3162 = vrot.slane %v3154, %v3161
        %v3164 = vunpack.c.l.s4 1983009808
        %v3165 = vunpack.c.0.s8 %v3164
        %v3166 = vlaneseq
        %v3167 = vshrl.u32 %v3166, 7
        %v3168 = vsub.s32 %v3165, %v3167
        %v3169 = vrot.slane %v3155, %v3168
        %v3170 = vcombine.low %v3114, %v3130
        %v3171 = vcombine.high %v3114, %v3130
        %v3173 = vunpack.c.l.s4 1934713408
        %v3174 = vunpack.c.0.s8 %v3173
        %v3175 = vlaneseq
        %v3176 = vshrl.u32 %v3175, 7
        %v3177 = vsub.s32 %v3174, %v3176
        %v3178 = vrot.slane %v3170, %v3177
        %v3180 = vunpack.c.l.s4 1934713408
        %v3181 = vunpack.c.0.s8 %v3180
        %v3182 = vlaneseq
        %v3183 = vshrl.u32 %v3182, 7
        %v3184 = vsub.s32 %v3181, %v3183
        %v3185 = vrot.slane %v3171, %v3184
        %v3186 = vcombine.low %v3121, %v3137
        %v3187 = vcombine.high %v3121, %v3137
        %v3189 = vunpack.c.l.s4 1934713408
        %v3190 = vunpack.c.0.s8 %v3189
        %v3191 = vlaneseq
        %v3192 = vshrl.u32 %v3191, 7
        %v3193 = vsub.s32 %v3190, %v3192
        %v3194 = vrot.slane %v3186, %v3193
        %v3196 = vunpack.c.l.s4 1934713408
        %v3197 = vunpack.c.0.s8 %v3196
        %v3198 = vlaneseq
        %v3199 = vshrl.u32 %v3198, 7
        %v3200 = vsub.s32 %v3197, %v3199
        %v3201 = vrot.slane %v3187, %v3200
        %v3202 = vcombine.low %v3146, %v3162
        %v3203 = vcombine.high %v3146, %v3162
        %v3205 = vunpack.c.l.s4 1934713408
        %v3206 = vunpack.c.0.s8 %v3205
        %v3207 = vlaneseq
        %v3208 = vshrl.u32 %v3207, 7
        %v3209 = vsub.s32 %v3206, %v3208
        %v3210 = vrot.slane %v3202, %v3209
        %v3212 = vunpack.c.l.s4 1934713408
        %v3213 = vunpack.c.0.s8 %v3212
        %v3214 = vlaneseq
        %v3215 = vshrl.u32 %v3214, 7
        %v3216 = vsub.s32 %v3213, %v3215
        %v3217 = vrot.slane %v3203, %v3216
        %v3218 = vcombine.low %v3153, %v3169
        %v3219 = vcombine.high %v3153, %v3169
        %v3221 = vunpack.c.l.s4 1934713408
        %v3222 = vunpack.c.0.s8 %v3221
        %v3223 = vlaneseq
        %v3224 = vshrl.u32 %v3223, 7
        %v3225 = vsub.s32 %v3222, %v3224
        %v3226 = vrot.slane %v3218, %v3225
        %v3228 = vunpack.c.l.s4 1934713408
        %v3229 = vunpack.c.0.s8 %v3228
        %v3230 = vlaneseq
        %v3231 = vshrl.u32 %v3230, 7
        %v3232 = vsub.s32 %v3229, %v3231
        %v3233 = vrot.slane %v3219, %v3232
        %v3234 = vcombine.low %v3178, %v3210
        %v3235 = vcombine.high %v3178, %v3210
        %v3236 = vcombine.low %v3185, %v3217
        %v3237 = vcombine.high %v3185, %v3217
        %v3238 = vcombine.low %v3194, %v3226
        %v3239 = vcombine.high %v3194, %v3226
        %v3240 = vcombine.low %v3201, %v3233
        %v3241 = vcombine.high %v3201, %v3233
        %3242 = vst.msk [vmem:[%s187] sm:$0xff] %vm452, %v3234
        %3243 = vst.msk [vmem:[%s187 + $0x8] sm:$0xff] %vm452, %v3235
        %3244 = vst.msk [vmem:[%s187 + $0x10] sm:$0xff] %vm452, %v3236
        %3245 = vst.msk [vmem:[%s187 + $0x18] sm:$0xff] %vm452, %v3237
        %3246 = vst.msk [vmem:[%s187 + $0x20] sm:$0xff] %vm452, %v3238
        %3247 = vst.msk [vmem:[%s187 + $0x28] sm:$0xff] %vm452, %v3239
        %3248 = vst.msk [vmem:[%s187 + $0x30] sm:$0xff] %vm452, %v3240
        %3249 = vst.msk [vmem:[%s187 + $0x38] sm:$0xff] %vm452, %v3241
        %s3250 = sand.u32 %s109, 1
        %s3251 = scalar_lea.sflag [#allocation3], %s3250
        %s3252 = sand.u32 %s109, 1
        %s3253 = smul.addr %s3252, 64
        %s3254 = scalar_lea.vmem [#allocation2], %s3253
        // Predicated region
        $region33: #{tpu_custom_call.1} parent=31 // pred_check
          %p3255 = pneg %p119
        $region34: #{tpu_custom_call.1} parent=31 // pred_check_branch
          %3257 = sbr.rel (%p3255) target = $region36
        $region35: #{tpu_custom_call.1} parent=31 // pred_region
          %s3259 = ssub.s32 1024, 1024
          %3260 = vsyncadd %s3251, %s3259
          %s3261 = smul.addr %s21, 8
          %s3262 = sadd.s32 %s22, %s3261
          %s3263 = smul.addr %s3262, 128
          %s3264 = scalar_lea.hbm %s3, %s3263
          %s3265 = sshll.u32 %s3254, 4
          %s3266 = int_to_ptr.vmem [resolvable:$true] %s3265
          %3271 = dma.vmem_to_hbm [thread:$0]  %s3266, 1024, %s3264, %s3251, 128, 128, 8
        $region36: #{tpu_custom_call.1} parent=31 // pred_fallthru
          _
      $region32: #{tpu_custom_call.1} parent=5 // pred_fallthru
        _
      %p3272 = scmp.le.s32.totalorder 2, %s12
      // Predicated region
      $region37: #{tpu_custom_call.1} parent=5 // pred_check
        %p3273 = pneg %p3272
      $region38: #{tpu_custom_call.1} parent=5 // pred_check_branch
        %3275 = sbr.rel (%p3273) target = $region40
      $region39: #{tpu_custom_call.1} parent=5 // pred_region
        %s3276 = ssub.s32 %s12, 2
        // Predicated region
        $region41: #{tpu_custom_call.1} parent=39 // pred_check
          %p3277 = pneg %p125
        $region42: #{tpu_custom_call.1} parent=39 // pred_check_branch
          %3279 = sbr.rel (%p3277) target = $region44
        $region43: #{tpu_custom_call.1} parent=39 // pred_region
          %s3280 = sand.u32 %s110, 1
          %s3281 = scalar_lea.sflag [#allocation3], %s3280
          %s3282 = sand.u32 %s110, 1
          %s3283 = smul.addr %s3282, 64
          %s3284 = scalar_lea.vmem [#allocation2], %s3283
          %3285 = dma.done %s3281, 1024
        $region44: #{tpu_custom_call.1} parent=39 // pred_fallthru
          _
      $region40: #{tpu_custom_call.1} parent=5 // pred_fallthru
        _
    $region6: #{tpu_custom_call.1} parent=1 // loop_footer
      %s16 = sadd.s32 1, %s12
    $region7: #{tpu_custom_call.1} parent=1 // loop_footer_branch
      %11 = sbr.rel target = $region3
    $region8: #{tpu_custom_call.1} parent=1 // loop_exit
      _
    %3286 = vsyncpa [#allocation3], 1
    %s3287 = scalar_lea.sflag [#allocation3], 1
    %3288 = vsyncpa %s3287, 1

</llo_original>
